<compile_context>
chip_gen: v5e
topology: v5e:2x2
jax: 0.10.0
libtpu: 0.0.40
codegen_flags: <defaults>
</compile_context>

<pallas_src>
import functools

import jax
import jax.numpy as jnp
from jax.experimental import pallas as pl
from jax.experimental.pallas import tpu as pltpu

# ----- config (mirrors `conf` in modelPrimeTestBase.MyModel) --------------------
SEQ_LEN = 8
NUM_DIGITS = 10
SEQ_FEATURES_DIM = 16      # LSTM hidden size H
SEQ_FEATURES_LAYERS = 1
SEQ_DROPOUT = 0.0          # identity (eval)
CLASS_LAYERS = 2           # one hidden Linear + ReLU, then outLayer
HIDDEN_DIM = 32
OUT_DIM = 1                # -> sigmoid
BATCH = 2

BBLK = 128                 # batch columns per grid step (one full lane width)
OUT_ROWS = 8               # output head row-padded to one sublane tile


# ----- kernel -------------------------------------------------------------------
def model_kernel(idx_ref, wcat_ref, whh_ref, whf_ref, whr_ref, bh_ref,
                 wo_ref, bo_ref, out_ref, *, seq_len, hidden, num_digits, bblk):
    H = hidden
    T = seq_len
    D1 = num_digits + 1

    # ---- in-kernel one-hot (+ ones row that folds the biases in) --------------
    idx = idx_ref[...].reshape(1, T * bblk)                       # int32 digit ids
    dig = jax.lax.broadcasted_iota(jnp.int32, (D1, T * bblk), 0)
    oh_aug = ((dig == idx) | (dig == num_digits)).astype(jnp.float32)  # (D1, T*bblk)

    # ---- ONE fused MXU pass: all timesteps, both directions, biases folded ----
    # wcat rows: [fwd i,f,o,g | rev i,f,o,g]; last wcat column = b_ih + b_hh.
    gates_all = jnp.dot(wcat_ref[...], oh_aug,
                        preferred_element_type=jnp.float32)       # (8H, T*bblk)

    whh = whh_ref[...]                                            # (4H, H) rows [i,f,o,g]

    def lstm_cell(g, c_prev):
        # gate rows ordered [i, f, o, g]: one sigmoid over 3H rows, one tanh over H
        s = jax.nn.sigmoid(g[0:3 * H])
        gc = jnp.tanh(g[3 * H:4 * H])
        c = s[H:2 * H] * c_prev + s[0:H] * gc
        h = s[2 * H:3 * H] * jnp.tanh(c)
        return h, c

    # ---- forward direction: only h @ Whh remains on the serial critical path --
    h = jnp.zeros((H, bblk), jnp.float32)
    c = jnp.zeros((H, bblk), jnp.float32)
    for t in range(T):
        g = gates_all[0:4 * H, t * bblk:(t + 1) * bblk]
        if t > 0:   # at t=0 the hidden state is zero -> skip the recurrence matmul
            g = g + jnp.dot(whh, h, preferred_element_type=jnp.float32)
        h, c = lstm_cell(g, c)

    # ---- reverse direction at the LAST index == its FIRST step (h0 = c0 = 0) --
    g_r = gates_all[4 * H:8 * H, (T - 1) * bblk:T * bblk]
    s_r = jax.nn.sigmoid(g_r[0:3 * H])
    c_r = s_r[0:H] * jnp.tanh(g_r[3 * H:4 * H])
    h_r = s_r[2 * H:3 * H] * jnp.tanh(c_r)

    # ---- head: hidden Linear + ReLU (two accumulated matmuls, no concat) ------
    hid = jnp.maximum(
        jnp.dot(whf_ref[...], h, preferred_element_type=jnp.float32)
        + jnp.dot(whr_ref[...], h_r, preferred_element_type=jnp.float32)
        + bh_ref[...], 0.0)                                       # (HIDDEN_DIM, bblk)

    # ---- out Linear (row-padded to 8) + sigmoid; full (8,128) lane-dense store -
    logits = (jnp.dot(wo_ref[...], hid, preferred_element_type=jnp.float32)
              + bo_ref[...])                                      # (OUT_ROWS, bblk)
    out_ref[...] = jax.nn.sigmoid(logits).reshape(1, OUT_ROWS, bblk)


# ----- parameters (deterministic synthetic init, PyTorch layouts) ----------------
def make_params(key):
    H = SEQ_FEATURES_DIM
    s_lstm = 1.0 / float(H) ** 0.5
    s_hid = 1.0 / float(2 * H) ** 0.5
    s_out = 1.0 / float(HIDDEN_DIM) ** 0.5
    keys = jax.random.split(key, 12)

    def u(k, shape, s):
        return jax.random.uniform(k, shape, jnp.float32, -s, s)

    return dict(
        # nn.LSTM layout, gate order [i, f, g, o]
        w_ih_f=u(keys[0], (4 * H, NUM_DIGITS), s_lstm),
        w_hh_f=u(keys[1], (4 * H, H), s_lstm),
        b_ih_f=u(keys[2], (4 * H,), s_lstm),
        b_hh_f=u(keys[3], (4 * H,), s_lstm),
        w_ih_r=u(keys[4], (4 * H, NUM_DIGITS), s_lstm),
        w_hh_r=u(keys[5], (4 * H, H), s_lstm),   # provably unused for out[:, -1, H:2H]
        b_ih_r=u(keys[6], (4 * H,), s_lstm),
        b_hh_r=u(keys[7], (4 * H,), s_lstm),
        # hidden Linear(2H -> HIDDEN_DIM)
        w_hid=u(keys[8], (HIDDEN_DIM, 2 * H), s_hid),
        b_hid=u(keys[9], (HIDDEN_DIM,), s_hid),
        # out Linear(HIDDEN_DIM -> OUT_DIM)
        w_out=u(keys[10], (OUT_DIM, HIDDEN_DIM), s_out),
        b_out=u(keys[11], (OUT_DIM,), s_out),
    )


# ----- wrapper --------------------------------------------------------------------
@jax.jit
def forward(x, params):
    H = SEQ_FEATURES_DIM
    T = SEQ_LEN
    D1 = NUM_DIGITS + 1

    # x.view(-1, seqLen, 1) + cast to long  (glue in plain JAX)
    x_idx = x.reshape(-1, T).astype(jnp.int32)
    B = x_idx.shape[0]

    # pad batch to a multiple of BBLK lane columns; padded rows sliced off at the end
    b_pad = ((B + BBLK - 1) // BBLK) * BBLK
    nblk = b_pad // BBLK
    x_pad = jnp.zeros((b_pad, T), jnp.int32).at[:B].set(x_idx)

    # per block, column layout t*BBLK + b (time-major groups of BBLK lanes)
    idx_in = jnp.transpose(x_pad.reshape(nblk, BBLK, T), (0, 2, 1)).reshape(
        nblk, 1, T * BBLK)

    # reorder PyTorch gate rows [i, f, g, o] -> [i, f, o, g] so one sigmoid covers
    # rows 0:3H and one tanh covers rows 3H:4H inside the kernel
    def reorder(w):
        return jnp.concatenate([w[0:2 * H], w[3 * H:4 * H], w[2 * H:3 * H]], axis=0)

    def gate_block(w_ih, b_ih, b_hh):
        b = (b_ih + b_hh).reshape(4 * H, 1)
        return reorder(jnp.concatenate([w_ih, b], axis=1))       # (4H, D+1)

    wcat = jnp.concatenate(
        [gate_block(params["w_ih_f"], params["b_ih_f"], params["b_hh_f"]),
         gate_block(params["w_ih_r"], params["b_ih_r"], params["b_hh_r"])],
        axis=0)                                                   # (8H, D+1)
    whh = reorder(params["w_hh_f"])                               # (4H, H)

    whf = params["w_hid"][:, :H]                                  # (HIDDEN_DIM, H)
    whr = params["w_hid"][:, H:]                                  # (HIDDEN_DIM, H)
    bh = params["b_hid"].reshape(HIDDEN_DIM, 1)

    # out head padded to one sublane tile (8 rows); row 0 is the real OUT_DIM=1
    wo = jnp.zeros((OUT_ROWS, HIDDEN_DIM), jnp.float32).at[:OUT_DIM].set(params["w_out"])
    bo = jnp.zeros((OUT_ROWS, 1), jnp.float32).at[:OUT_DIM, 0].set(params["b_out"])

    kernel = functools.partial(model_kernel, seq_len=T, hidden=H,
                               num_digits=NUM_DIGITS, bblk=BBLK)

    out = pl.pallas_call(
        kernel,
        out_shape=jax.ShapeDtypeStruct((nblk, OUT_ROWS, BBLK), jnp.float32),
        grid=(nblk,),
        in_specs=[
            pl.BlockSpec((1, 1, T * BBLK), lambda i: (i, 0, 0)),     # int32 digit ids per block
            pl.BlockSpec((8 * H, D1), lambda i: (0, 0)),             # fused input wts + bias
            pl.BlockSpec((4 * H, H), lambda i: (0, 0)),              # forward Whh
            pl.BlockSpec((HIDDEN_DIM, H), lambda i: (0, 0)),         # hidden Linear (fwd half)
            pl.BlockSpec((HIDDEN_DIM, H), lambda i: (0, 0)),         # hidden Linear (rev half)
            pl.BlockSpec((HIDDEN_DIM, 1), lambda i: (0, 0)),         # hidden bias
            pl.BlockSpec((OUT_ROWS, HIDDEN_DIM), lambda i: (0, 0)),  # out Linear (row-padded)
            pl.BlockSpec((OUT_ROWS, 1), lambda i: (0, 0)),           # out bias
        ],
        out_specs=pl.BlockSpec((1, OUT_ROWS, BBLK), lambda i: (i, 0, 0)),
        compiler_params=pltpu.CompilerParams(
            dimension_semantics=("parallel",)),                      # batch blocks -> TCs
    )(idx_in, wcat, whh, whf, whr, bh, wo, bo)

    # row 0 of each block = sigmoid logit; lane b = batch element within the block
    out_flat = jnp.transpose(out[:, :OUT_DIM, :], (0, 2, 1)).reshape(b_pad, OUT_DIM)
    return out_flat[:B]


# ----- demo ------------------------------------------------------------------------
if __name__ == "__main__":
    key = jax.random.PRNGKey(0)
    k_params, k_x = jax.random.split(key)

    params = make_params(k_params)
    # digit sequence input, shape (BATCH, SEQ_LEN), values in [0, NUM_DIGITS)
    x = jax.random.randint(k_x, (BATCH, SEQ_LEN), 0, NUM_DIGITS).astype(jnp.float32)

    out = forward(x, params)
    jax.block_until_ready(out)

    assert out.shape == (BATCH, OUT_DIM)
    assert bool(jnp.all(jnp.isfinite(out)))
    assert bool(jnp.all((out > 0.0) & (out < 1.0)))   # sigmoid output
    print("KERNEL_OK")
</pallas_src>

<mosaic_0001>
module attributes {stable_mosaic.version = 11 : i64} {
  func.func @model_kernel(%arg0: i32, %arg1: memref<1x1x1024xi32, #tpu.memory_space<vmem>>, %arg2: memref<128x11xf32, #tpu.memory_space<vmem>>, %arg3: memref<64x16xf32, #tpu.memory_space<vmem>>, %arg4: memref<32x16xf32, #tpu.memory_space<vmem>>, %arg5: memref<32x16xf32, #tpu.memory_space<vmem>>, %arg6: memref<32x1xf32, #tpu.memory_space<vmem>>, %arg7: memref<8x32xf32, #tpu.memory_space<vmem>>, %arg8: memref<8x1xf32, #tpu.memory_space<vmem>>, %arg9: memref<1x8x128xf32, #tpu.memory_space<vmem>>) attributes {dimension_semantics = [#tpu.dimension_semantics<parallel>], iteration_bounds = array<i64: 1>, scalar_prefetch = 0 : i64, scratch_operands = 0 : i64, tpu.core_type = #tpu.core_type<tc>, window_params = [{transform_indices = @transform_0, window_bounds = array<i64: 1, 1, 1024>}, {pipeline_mode = #tpu.pipeline_mode<synchronous>, transform_indices = @transform_1, window_bounds = array<i64: 128, 11>}, {pipeline_mode = #tpu.pipeline_mode<synchronous>, transform_indices = @transform_2, window_bounds = array<i64: 64, 16>}, {pipeline_mode = #tpu.pipeline_mode<synchronous>, transform_indices = @transform_3, window_bounds = array<i64: 32, 16>}, {pipeline_mode = #tpu.pipeline_mode<synchronous>, transform_indices = @transform_4, window_bounds = array<i64: 32, 16>}, {pipeline_mode = #tpu.pipeline_mode<synchronous>, transform_indices = @transform_5, window_bounds = array<i64: 32, 1>}, {pipeline_mode = #tpu.pipeline_mode<synchronous>, transform_indices = @transform_6, window_bounds = array<i64: 8, 32>}, {pipeline_mode = #tpu.pipeline_mode<synchronous>, transform_indices = @transform_7, window_bounds = array<i64: 8, 1>}, {transform_indices = @transform_8, window_bounds = array<i64: 1, 8, 128>}]} {
    %c0 = arith.constant 0 : index
    %c0_0 = arith.constant 0 : index
    %c0_1 = arith.constant 0 : index
    %0 = vector.load %arg1[%c0, %c0_0, %c0_1] : memref<1x1x1024xi32, #tpu.memory_space<vmem>>, vector<1x1x1024xi32>
    %1 = vector.shape_cast %0 : vector<1x1x1024xi32> to vector<1x1024xi32>
    %2 = tpu.iota {dimensions = array<i32: 0>} : vector<11x1024xi32>
    %3 = vector.broadcast %1 : vector<1x1024xi32> to vector<11x1024xi32>
    %4 = arith.cmpi eq, %2, %3 : vector<11x1024xi32>
    %c10_i32 = arith.constant 10 : i32
    %5 = vector.broadcast %c10_i32 : i32 to vector<11x1024xi32>
    %6 = arith.cmpi eq, %2, %5 : vector<11x1024xi32>
    %7 = arith.ori %4, %6 : vector<11x1024xi1>
    %8 = arith.extui %7 : vector<11x1024xi1> to vector<11x1024xi32>
    %9 = arith.sitofp %8 : vector<11x1024xi32> to vector<11x1024xf32>
    %c0_2 = arith.constant 0 : index
    %c0_3 = arith.constant 0 : index
    %10 = vector.load %arg2[%c0_2, %c0_3] : memref<128x11xf32, #tpu.memory_space<vmem>>, vector<128x11xf32>
    %cst = arith.constant dense<0.000000e+00> : vector<128x1024xf32>
    %11 = tpu.matmul %10, %9, %cst {dimension_numbers = #tpu.dot_dimension_numbers<[1], [0], [0], [1], [0, 0, 1, 1], [], []>} : vector<128x11xf32>, vector<11x1024xf32>, vector<128x1024xf32> -> vector<128x1024xf32>
    %c0_4 = arith.constant 0 : index
    %c0_5 = arith.constant 0 : index
    %12 = vector.load %arg3[%c0_4, %c0_5] : memref<64x16xf32, #tpu.memory_space<vmem>>, vector<64x16xf32>
    %cst_6 = arith.constant 0.000000e+00 : f32
    %13 = vector.broadcast %cst_6 : f32 to vector<16x128xf32>
    %14 = vector.extract_strided_slice %11 {offsets = [0, 0], sizes = [64, 128], strides = [1, 1]} : vector<128x1024xf32> to vector<64x128xf32>
    %15 = vector.extract_strided_slice %14 {offsets = [0, 0], sizes = [48, 128], strides = [1, 1]} : vector<64x128xf32> to vector<48x128xf32>
    %16 = arith.negf %15 : vector<48x128xf32>
    %17 = math.exp %16 : vector<48x128xf32>
    %cst_7 = arith.constant 1.000000e+00 : f32
    %18 = vector.broadcast %cst_7 : f32 to vector<48x128xf32>
    %19 = arith.addf %18, %17 : vector<48x128xf32>
    %20 = arith.divf %18, %19 : vector<48x128xf32>
    %21 = vector.extract_strided_slice %14 {offsets = [48, 0], sizes = [16, 128], strides = [1, 1]} : vector<64x128xf32> to vector<16x128xf32>
    %22 = math.tanh %21 : vector<16x128xf32>
    %23 = vector.extract_strided_slice %20 {offsets = [16, 0], sizes = [16, 128], strides = [1, 1]} : vector<48x128xf32> to vector<16x128xf32>
    %24 = arith.mulf %23, %13 : vector<16x128xf32>
    %25 = vector.extract_strided_slice %20 {offsets = [0, 0], sizes = [16, 128], strides = [1, 1]} : vector<48x128xf32> to vector<16x128xf32>
    %26 = arith.mulf %25, %22 : vector<16x128xf32>
    %27 = arith.addf %24, %26 : vector<16x128xf32>
    %28 = vector.extract_strided_slice %20 {offsets = [32, 0], sizes = [16, 128], strides = [1, 1]} : vector<48x128xf32> to vector<16x128xf32>
    %29 = math.tanh %27 : vector<16x128xf32>
    %30 = arith.mulf %28, %29 : vector<16x128xf32>
    %31 = vector.extract_strided_slice %11 {offsets = [0, 128], sizes = [64, 128], strides = [1, 1]} : vector<128x1024xf32> to vector<64x128xf32>
    %cst_8 = arith.constant dense<0.000000e+00> : vector<64x128xf32>
    %32 = tpu.matmul %12, %30, %cst_8 {dimension_numbers = #tpu.dot_dimension_numbers<[1], [0], [0], [1], [0, 0, 1, 1], [], []>} : vector<64x16xf32>, vector<16x128xf32>, vector<64x128xf32> -> vector<64x128xf32>
    %33 = arith.addf %31, %32 : vector<64x128xf32>
    %34 = vector.extract_strided_slice %33 {offsets = [0, 0], sizes = [48, 128], strides = [1, 1]} : vector<64x128xf32> to vector<48x128xf32>
    %35 = arith.negf %34 : vector<48x128xf32>
    %36 = math.exp %35 : vector<48x128xf32>
    %cst_9 = arith.constant 1.000000e+00 : f32
    %37 = vector.broadcast %cst_9 : f32 to vector<48x128xf32>
    %38 = arith.addf %37, %36 : vector<48x128xf32>
    %39 = arith.divf %37, %38 : vector<48x128xf32>
    %40 = vector.extract_strided_slice %33 {offsets = [48, 0], sizes = [16, 128], strides = [1, 1]} : vector<64x128xf32> to vector<16x128xf32>
    %41 = math.tanh %40 : vector<16x128xf32>
    %42 = vector.extract_strided_slice %39 {offsets = [16, 0], sizes = [16, 128], strides = [1, 1]} : vector<48x128xf32> to vector<16x128xf32>
    %43 = arith.mulf %42, %27 : vector<16x128xf32>
    %44 = vector.extract_strided_slice %39 {offsets = [0, 0], sizes = [16, 128], strides = [1, 1]} : vector<48x128xf32> to vector<16x128xf32>
    %45 = arith.mulf %44, %41 : vector<16x128xf32>
    %46 = arith.addf %43, %45 : vector<16x128xf32>
    %47 = vector.extract_strided_slice %39 {offsets = [32, 0], sizes = [16, 128], strides = [1, 1]} : vector<48x128xf32> to vector<16x128xf32>
    %48 = math.tanh %46 : vector<16x128xf32>
    %49 = arith.mulf %47, %48 : vector<16x128xf32>
    %50 = vector.extract_strided_slice %11 {offsets = [0, 256], sizes = [64, 128], strides = [1, 1]} : vector<128x1024xf32> to vector<64x128xf32>
    %cst_10 = arith.constant dense<0.000000e+00> : vector<64x128xf32>
    %51 = tpu.matmul %12, %49, %cst_10 {dimension_numbers = #tpu.dot_dimension_numbers<[1], [0], [0], [1], [0, 0, 1, 1], [], []>} : vector<64x16xf32>, vector<16x128xf32>, vector<64x128xf32> -> vector<64x128xf32>
    %52 = arith.addf %50, %51 : vector<64x128xf32>
    %53 = vector.extract_strided_slice %52 {offsets = [0, 0], sizes = [48, 128], strides = [1, 1]} : vector<64x128xf32> to vector<48x128xf32>
    %54 = arith.negf %53 : vector<48x128xf32>
    %55 = math.exp %54 : vector<48x128xf32>
    %cst_11 = arith.constant 1.000000e+00 : f32
    %56 = vector.broadcast %cst_11 : f32 to vector<48x128xf32>
    %57 = arith.addf %56, %55 : vector<48x128xf32>
    %58 = arith.divf %56, %57 : vector<48x128xf32>
    %59 = vector.extract_strided_slice %52 {offsets = [48, 0], sizes = [16, 128], strides = [1, 1]} : vector<64x128xf32> to vector<16x128xf32>
    %60 = math.tanh %59 : vector<16x128xf32>
    %61 = vector.extract_strided_slice %58 {offsets = [16, 0], sizes = [16, 128], strides = [1, 1]} : vector<48x128xf32> to vector<16x128xf32>
    %62 = arith.mulf %61, %46 : vector<16x128xf32>
    %63 = vector.extract_strided_slice %58 {offsets = [0, 0], sizes = [16, 128], strides = [1, 1]} : vector<48x128xf32> to vector<16x128xf32>
    %64 = arith.mulf %63, %60 : vector<16x128xf32>
    %65 = arith.addf %62, %64 : vector<16x128xf32>
    %66 = vector.extract_strided_slice %58 {offsets = [32, 0], sizes = [16, 128], strides = [1, 1]} : vector<48x128xf32> to vector<16x128xf32>
    %67 = math.tanh %65 : vector<16x128xf32>
    %68 = arith.mulf %66, %67 : vector<16x128xf32>
    %69 = vector.extract_strided_slice %11 {offsets = [0, 384], sizes = [64, 128], strides = [1, 1]} : vector<128x1024xf32> to vector<64x128xf32>
    %cst_12 = arith.constant dense<0.000000e+00> : vector<64x128xf32>
    %70 = tpu.matmul %12, %68, %cst_12 {dimension_numbers = #tpu.dot_dimension_numbers<[1], [0], [0], [1], [0, 0, 1, 1], [], []>} : vector<64x16xf32>, vector<16x128xf32>, vector<64x128xf32> -> vector<64x128xf32>
    %71 = arith.addf %69, %70 : vector<64x128xf32>
    %72 = vector.extract_strided_slice %71 {offsets = [0, 0], sizes = [48, 128], strides = [1, 1]} : vector<64x128xf32> to vector<48x128xf32>
    %73 = arith.negf %72 : vector<48x128xf32>
    %74 = math.exp %73 : vector<48x128xf32>
    %cst_13 = arith.constant 1.000000e+00 : f32
    %75 = vector.broadcast %cst_13 : f32 to vector<48x128xf32>
    %76 = arith.addf %75, %74 : vector<48x128xf32>
    %77 = arith.divf %75, %76 : vector<48x128xf32>
    %78 = vector.extract_strided_slice %71 {offsets = [48, 0], sizes = [16, 128], strides = [1, 1]} : vector<64x128xf32> to vector<16x128xf32>
    %79 = math.tanh %78 : vector<16x128xf32>
    %80 = vector.extract_strided_slice %77 {offsets = [16, 0], sizes = [16, 128], strides = [1, 1]} : vector<48x128xf32> to vector<16x128xf32>
    %81 = arith.mulf %80, %65 : vector<16x128xf32>
    %82 = vector.extract_strided_slice %77 {offsets = [0, 0], sizes = [16, 128], strides = [1, 1]} : vector<48x128xf32> to vector<16x128xf32>
    %83 = arith.mulf %82, %79 : vector<16x128xf32>
    %84 = arith.addf %81, %83 : vector<16x128xf32>
    %85 = vector.extract_strided_slice %77 {offsets = [32, 0], sizes = [16, 128], strides = [1, 1]} : vector<48x128xf32> to vector<16x128xf32>
    %86 = math.tanh %84 : vector<16x128xf32>
    %87 = arith.mulf %85, %86 : vector<16x128xf32>
    %88 = vector.extract_strided_slice %11 {offsets = [0, 512], sizes = [64, 128], strides = [1, 1]} : vector<128x1024xf32> to vector<64x128xf32>
    %cst_14 = arith.constant dense<0.000000e+00> : vector<64x128xf32>
    %89 = tpu.matmul %12, %87, %cst_14 {dimension_numbers = #tpu.dot_dimension_numbers<[1], [0], [0], [1], [0, 0, 1, 1], [], []>} : vector<64x16xf32>, vector<16x128xf32>, vector<64x128xf32> -> vector<64x128xf32>
    %90 = arith.addf %88, %89 : vector<64x128xf32>
    %91 = vector.extract_strided_slice %90 {offsets = [0, 0], sizes = [48, 128], strides = [1, 1]} : vector<64x128xf32> to vector<48x128xf32>
    %92 = arith.negf %91 : vector<48x128xf32>
    %93 = math.exp %92 : vector<48x128xf32>
    %cst_15 = arith.constant 1.000000e+00 : f32
    %94 = vector.broadcast %cst_15 : f32 to vector<48x128xf32>
    %95 = arith.addf %94, %93 : vector<48x128xf32>
    %96 = arith.divf %94, %95 : vector<48x128xf32>
    %97 = vector.extract_strided_slice %90 {offsets = [48, 0], sizes = [16, 128], strides = [1, 1]} : vector<64x128xf32> to vector<16x128xf32>
    %98 = math.tanh %97 : vector<16x128xf32>
    %99 = vector.extract_strided_slice %96 {offsets = [16, 0], sizes = [16, 128], strides = [1, 1]} : vector<48x128xf32> to vector<16x128xf32>
    %100 = arith.mulf %99, %84 : vector<16x128xf32>
    %101 = vector.extract_strided_slice %96 {offsets = [0, 0], sizes = [16, 128], strides = [1, 1]} : vector<48x128xf32> to vector<16x128xf32>
    %102 = arith.mulf %101, %98 : vector<16x128xf32>
    %103 = arith.addf %100, %102 : vector<16x128xf32>
    %104 = vector.extract_strided_slice %96 {offsets = [32, 0], sizes = [16, 128], strides = [1, 1]} : vector<48x128xf32> to vector<16x128xf32>
    %105 = math.tanh %103 : vector<16x128xf32>
    %106 = arith.mulf %104, %105 : vector<16x128xf32>
    %107 = vector.extract_strided_slice %11 {offsets = [0, 640], sizes = [64, 128], strides = [1, 1]} : vector<128x1024xf32> to vector<64x128xf32>
    %cst_16 = arith.constant dense<0.000000e+00> : vector<64x128xf32>
    %108 = tpu.matmul %12, %106, %cst_16 {dimension_numbers = #tpu.dot_dimension_numbers<[1], [0], [0], [1], [0, 0, 1, 1], [], []>} : vector<64x16xf32>, vector<16x128xf32>, vector<64x128xf32> -> vector<64x128xf32>
    %109 = arith.addf %107, %108 : vector<64x128xf32>
    %110 = vector.extract_strided_slice %109 {offsets = [0, 0], sizes = [48, 128], strides = [1, 1]} : vector<64x128xf32> to vector<48x128xf32>
    %111 = arith.negf %110 : vector<48x128xf32>
    %112 = math.exp %111 : vector<48x128xf32>
    %cst_17 = arith.constant 1.000000e+00 : f32
    %113 = vector.broadcast %cst_17 : f32 to vector<48x128xf32>
    %114 = arith.addf %113, %112 : vector<48x128xf32>
    %115 = arith.divf %113, %114 : vector<48x128xf32>
    %116 = vector.extract_strided_slice %109 {offsets = [48, 0], sizes = [16, 128], strides = [1, 1]} : vector<64x128xf32> to vector<16x128xf32>
    %117 = math.tanh %116 : vector<16x128xf32>
    %118 = vector.extract_strided_slice %115 {offsets = [16, 0], sizes = [16, 128], strides = [1, 1]} : vector<48x128xf32> to vector<16x128xf32>
    %119 = arith.mulf %118, %103 : vector<16x128xf32>
    %120 = vector.extract_strided_slice %115 {offsets = [0, 0], sizes = [16, 128], strides = [1, 1]} : vector<48x128xf32> to vector<16x128xf32>
    %121 = arith.mulf %120, %117 : vector<16x128xf32>
    %122 = arith.addf %119, %121 : vector<16x128xf32>
    %123 = vector.extract_strided_slice %115 {offsets = [32, 0], sizes = [16, 128], strides = [1, 1]} : vector<48x128xf32> to vector<16x128xf32>
    %124 = math.tanh %122 : vector<16x128xf32>
    %125 = arith.mulf %123, %124 : vector<16x128xf32>
    %126 = vector.extract_strided_slice %11 {offsets = [0, 768], sizes = [64, 128], strides = [1, 1]} : vector<128x1024xf32> to vector<64x128xf32>
    %cst_18 = arith.constant dense<0.000000e+00> : vector<64x128xf32>
    %127 = tpu.matmul %12, %125, %cst_18 {dimension_numbers = #tpu.dot_dimension_numbers<[1], [0], [0], [1], [0, 0, 1, 1], [], []>} : vector<64x16xf32>, vector<16x128xf32>, vector<64x128xf32> -> vector<64x128xf32>
    %128 = arith.addf %126, %127 : vector<64x128xf32>
    %129 = vector.extract_strided_slice %128 {offsets = [0, 0], sizes = [48, 128], strides = [1, 1]} : vector<64x128xf32> to vector<48x128xf32>
    %130 = arith.negf %129 : vector<48x128xf32>
    %131 = math.exp %130 : vector<48x128xf32>
    %cst_19 = arith.constant 1.000000e+00 : f32
    %132 = vector.broadcast %cst_19 : f32 to vector<48x128xf32>
    %133 = arith.addf %132, %131 : vector<48x128xf32>
    %134 = arith.divf %132, %133 : vector<48x128xf32>
    %135 = vector.extract_strided_slice %128 {offsets = [48, 0], sizes = [16, 128], strides = [1, 1]} : vector<64x128xf32> to vector<16x128xf32>
    %136 = math.tanh %135 : vector<16x128xf32>
    %137 = vector.extract_strided_slice %134 {offsets = [16, 0], sizes = [16, 128], strides = [1, 1]} : vector<48x128xf32> to vector<16x128xf32>
    %138 = arith.mulf %137, %122 : vector<16x128xf32>
    %139 = vector.extract_strided_slice %134 {offsets = [0, 0], sizes = [16, 128], strides = [1, 1]} : vector<48x128xf32> to vector<16x128xf32>
    %140 = arith.mulf %139, %136 : vector<16x128xf32>
    %141 = arith.addf %138, %140 : vector<16x128xf32>
    %142 = vector.extract_strided_slice %134 {offsets = [32, 0], sizes = [16, 128], strides = [1, 1]} : vector<48x128xf32> to vector<16x128xf32>
    %143 = math.tanh %141 : vector<16x128xf32>
    %144 = arith.mulf %142, %143 : vector<16x128xf32>
    %145 = vector.extract_strided_slice %11 {offsets = [0, 896], sizes = [64, 128], strides = [1, 1]} : vector<128x1024xf32> to vector<64x128xf32>
    %cst_20 = arith.constant dense<0.000000e+00> : vector<64x128xf32>
    %146 = tpu.matmul %12, %144, %cst_20 {dimension_numbers = #tpu.dot_dimension_numbers<[1], [0], [0], [1], [0, 0, 1, 1], [], []>} : vector<64x16xf32>, vector<16x128xf32>, vector<64x128xf32> -> vector<64x128xf32>
    %147 = arith.addf %145, %146 : vector<64x128xf32>
    %148 = vector.extract_strided_slice %147 {offsets = [0, 0], sizes = [48, 128], strides = [1, 1]} : vector<64x128xf32> to vector<48x128xf32>
    %149 = arith.negf %148 : vector<48x128xf32>
    %150 = math.exp %149 : vector<48x128xf32>
    %cst_21 = arith.constant 1.000000e+00 : f32
    %151 = vector.broadcast %cst_21 : f32 to vector<48x128xf32>
    %152 = arith.addf %151, %150 : vector<48x128xf32>
    %153 = arith.divf %151, %152 : vector<48x128xf32>
    %154 = vector.extract_strided_slice %147 {offsets = [48, 0], sizes = [16, 128], strides = [1, 1]} : vector<64x128xf32> to vector<16x128xf32>
    %155 = math.tanh %154 : vector<16x128xf32>
    %156 = vector.extract_strided_slice %153 {offsets = [16, 0], sizes = [16, 128], strides = [1, 1]} : vector<48x128xf32> to vector<16x128xf32>
    %157 = arith.mulf %156, %141 : vector<16x128xf32>
    %158 = vector.extract_strided_slice %153 {offsets = [0, 0], sizes = [16, 128], strides = [1, 1]} : vector<48x128xf32> to vector<16x128xf32>
    %159 = arith.mulf %158, %155 : vector<16x128xf32>
    %160 = arith.addf %157, %159 : vector<16x128xf32>
    %161 = vector.extract_strided_slice %153 {offsets = [32, 0], sizes = [16, 128], strides = [1, 1]} : vector<48x128xf32> to vector<16x128xf32>
    %162 = math.tanh %160 : vector<16x128xf32>
    %163 = arith.mulf %161, %162 : vector<16x128xf32>
    %164 = vector.extract_strided_slice %11 {offsets = [64, 896], sizes = [64, 128], strides = [1, 1]} : vector<128x1024xf32> to vector<64x128xf32>
    %165 = vector.extract_strided_slice %164 {offsets = [0, 0], sizes = [48, 128], strides = [1, 1]} : vector<64x128xf32> to vector<48x128xf32>
    %166 = arith.negf %165 : vector<48x128xf32>
    %167 = math.exp %166 : vector<48x128xf32>
    %cst_22 = arith.constant 1.000000e+00 : f32
    %168 = vector.broadcast %cst_22 : f32 to vector<48x128xf32>
    %169 = arith.addf %168, %167 : vector<48x128xf32>
    %170 = arith.divf %168, %169 : vector<48x128xf32>
    %171 = vector.extract_strided_slice %170 {offsets = [0, 0], sizes = [16, 128], strides = [1, 1]} : vector<48x128xf32> to vector<16x128xf32>
    %172 = vector.extract_strided_slice %164 {offsets = [48, 0], sizes = [16, 128], strides = [1, 1]} : vector<64x128xf32> to vector<16x128xf32>
    %173 = math.tanh %172 : vector<16x128xf32>
    %174 = arith.mulf %171, %173 : vector<16x128xf32>
    %175 = vector.extract_strided_slice %170 {offsets = [32, 0], sizes = [16, 128], strides = [1, 1]} : vector<48x128xf32> to vector<16x128xf32>
    %176 = math.tanh %174 : vector<16x128xf32>
    %177 = arith.mulf %175, %176 : vector<16x128xf32>
    %c0_23 = arith.constant 0 : index
    %c0_24 = arith.constant 0 : index
    %178 = vector.load %arg4[%c0_23, %c0_24] : memref<32x16xf32, #tpu.memory_space<vmem>>, vector<32x16xf32>
    %cst_25 = arith.constant dense<0.000000e+00> : vector<32x128xf32>
    %179 = tpu.matmul %178, %163, %cst_25 {dimension_numbers = #tpu.dot_dimension_numbers<[1], [0], [0], [1], [0, 0, 1, 1], [], []>} : vector<32x16xf32>, vector<16x128xf32>, vector<32x128xf32> -> vector<32x128xf32>
    %c0_26 = arith.constant 0 : index
    %c0_27 = arith.constant 0 : index
    %180 = vector.load %arg5[%c0_26, %c0_27] : memref<32x16xf32, #tpu.memory_space<vmem>>, vector<32x16xf32>
    %cst_28 = arith.constant dense<0.000000e+00> : vector<32x128xf32>
    %181 = tpu.matmul %180, %177, %cst_28 {dimension_numbers = #tpu.dot_dimension_numbers<[1], [0], [0], [1], [0, 0, 1, 1], [], []>} : vector<32x16xf32>, vector<16x128xf32>, vector<32x128xf32> -> vector<32x128xf32>
    %182 = arith.addf %179, %181 : vector<32x128xf32>
    %c0_29 = arith.constant 0 : index
    %c0_30 = arith.constant 0 : index
    %183 = vector.load %arg6[%c0_29, %c0_30] : memref<32x1xf32, #tpu.memory_space<vmem>>, vector<32x1xf32>
    %184 = vector.broadcast %183 : vector<32x1xf32> to vector<32x128xf32>
    %185 = arith.addf %182, %184 : vector<32x128xf32>
    %cst_31 = arith.constant 0.000000e+00 : f32
    %186 = vector.broadcast %cst_31 : f32 to vector<32x128xf32>
    %187 = arith.maximumf %185, %186 : vector<32x128xf32>
    %c0_32 = arith.constant 0 : index
    %c0_33 = arith.constant 0 : index
    %188 = vector.load %arg7[%c0_32, %c0_33] : memref<8x32xf32, #tpu.memory_space<vmem>>, vector<8x32xf32>
    %cst_34 = arith.constant dense<0.000000e+00> : vector<8x128xf32>
    %189 = tpu.matmul %188, %187, %cst_34 {dimension_numbers = #tpu.dot_dimension_numbers<[1], [0], [0], [1], [0, 0, 1, 1], [], []>} : vector<8x32xf32>, vector<32x128xf32>, vector<8x128xf32> -> vector<8x128xf32>
    %c0_35 = arith.constant 0 : index
    %c0_36 = arith.constant 0 : index
    %190 = vector.load %arg8[%c0_35, %c0_36] : memref<8x1xf32, #tpu.memory_space<vmem>>, vector<8x1xf32>
    %191 = vector.broadcast %190 : vector<8x1xf32> to vector<8x128xf32>
    %192 = arith.addf %189, %191 : vector<8x128xf32>
    %193 = arith.negf %192 : vector<8x128xf32>
    %194 = math.exp %193 : vector<8x128xf32>
    %cst_37 = arith.constant 1.000000e+00 : f32
    %195 = vector.broadcast %cst_37 : f32 to vector<8x128xf32>
    %196 = arith.addf %195, %194 : vector<8x128xf32>
    %197 = arith.divf %195, %196 : vector<8x128xf32>
    %198 = vector.shape_cast %197 : vector<8x128xf32> to vector<1x8x128xf32>
    %c0_38 = arith.constant 0 : index
    %c0_39 = arith.constant 0 : index
    %c0_40 = arith.constant 0 : index
    %199 = vector.load %arg9[%c0_38, %c0_39, %c0_40] : memref<1x8x128xf32, #tpu.memory_space<vmem>>, vector<1x8x128xf32>
    tpu.vector_store %arg9[%c0_38, %c0_39, %c0_40], %198 {strides = array<i32>} : memref<1x8x128xf32, #tpu.memory_space<vmem>>, vector<1x8x128xf32>,
    return
  }
  func.func @transform_0(%arg0: i32) -> (i32, i32, i32) {
    %c0_i32 = arith.constant 0 : i32
    %c0_i32_0 = arith.constant 0 : i32
    %c0_i32_1 = arith.constant 0 : i32
    return %arg0, %c0_i32, %c0_i32_0 : i32, i32, i32
  }
  func.func @transform_1(%arg0: i32) -> (i32, i32) {
    %c0_i32 = arith.constant 0 : i32
    %c0_i32_0 = arith.constant 0 : i32
    %c0_i32_1 = arith.constant 0 : i32
    return %c0_i32, %c0_i32_0 : i32, i32
  }
  func.func @transform_2(%arg0: i32) -> (i32, i32) {
    %c0_i32 = arith.constant 0 : i32
    %c0_i32_0 = arith.constant 0 : i32
    %c0_i32_1 = arith.constant 0 : i32
    return %c0_i32, %c0_i32_0 : i32, i32
  }
  func.func @transform_3(%arg0: i32) -> (i32, i32) {
    %c0_i32 = arith.constant 0 : i32
    %c0_i32_0 = arith.constant 0 : i32
    %c0_i32_1 = arith.constant 0 : i32
    return %c0_i32, %c0_i32_0 : i32, i32
  }
  func.func @transform_4(%arg0: i32) -> (i32, i32) {
    %c0_i32 = arith.constant 0 : i32
    %c0_i32_0 = arith.constant 0 : i32
    %c0_i32_1 = arith.constant 0 : i32
    return %c0_i32, %c0_i32_0 : i32, i32
  }
  func.func @transform_5(%arg0: i32) -> (i32, i32) {
    %c0_i32 = arith.constant 0 : i32
    %c0_i32_0 = arith.constant 0 : i32
    %c0_i32_1 = arith.constant 0 : i32
    return %c0_i32, %c0_i32_0 : i32, i32
  }
  func.func @transform_6(%arg0: i32) -> (i32, i32) {
    %c0_i32 = arith.constant 0 : i32
    %c0_i32_0 = arith.constant 0 : i32
    %c0_i32_1 = arith.constant 0 : i32
    return %c0_i32, %c0_i32_0 : i32, i32
  }
  func.func @transform_7(%arg0: i32) -> (i32, i32) {
    %c0_i32 = arith.constant 0 : i32
    %c0_i32_0 = arith.constant 0 : i32
    %c0_i32_1 = arith.constant 0 : i32
    return %c0_i32, %c0_i32_0 : i32, i32
  }
  func.func @transform_8(%arg0: i32) -> (i32, i32, i32) {
    %c0_i32 = arith.constant 0 : i32
    %c0_i32_0 = arith.constant 0 : i32
    %c0_i32_1 = arith.constant 0 : i32
    return %arg0, %c0_i32, %c0_i32_0 : i32, i32, i32
  }
}

</mosaic_0001>

<llo_original>
// kernel: forward.1
$region0: #{forward.1}
  #allocation0 [shape = 'u32[]', space=smem, size = 0x4, offset = 0x4, fixed_abs, tag = 'smem constant byte address 0x4 - core index']
  #allocation1 [shape = 'u32[72,128]{1,0:T(1,128)}', space=vmem, size = 0x9000, scoped, tag = 'internal scratch']
  %s0 = inlined_call_operand.vmem [shape: s32[1,1,1024], index: 0, kind: input, shape index: {}]
  %s1 = inlined_call_operand.vmem [shape: f32[128,11], index: 1, kind: input, shape index: {}]
  %s2 = inlined_call_operand.vmem [shape: f32[64,16], index: 2, kind: input, shape index: {}]
  %s3 = inlined_call_operand.vmem [shape: f32[32,16], index: 3, kind: input, shape index: {}]
  %s4 = inlined_call_operand.vmem [shape: f32[32,16], index: 4, kind: input, shape index: {}]
  %s5 = inlined_call_operand.vmem [shape: f32[32,1], index: 5, kind: input, shape index: {}]
  %s6 = inlined_call_operand.vmem [shape: f32[8,32], index: 6, kind: input, shape index: {}]
  %s7 = inlined_call_operand.vmem [shape: f32[8,1], index: 7, kind: input, shape index: {}]
  %s8 = inlined_call_operand.vmem [shape: f32[1,8,128], index: 8, kind: output, shape index: {}]
  %s9 = sld [smem:[#allocation0]]
  $region42: #{forward.1} parent=0
    _
  %s11 = ssub.s32 1, %s9
  %s12 = scalar_select 0, %s11, %s9
  // Predicated region
  $region2: #{forward.1} parent=0 // pred_check
    _
  $region3: #{forward.1} parent=0 // pred_check_branch
    %14 = sbr.rel (0) target = $region5
  $region4: #{forward.1} parent=0 // pred_region
    _
  $region5: #{forward.1} parent=0 // pred_fallthru
    _
  // Predicated region
  $region6: #{forward.1} parent=0 // pred_check
    _
  $region7: #{forward.1} parent=0 // pred_check_branch
    %16 = sbr.rel (0) target = $region9
  $region8: #{forward.1} parent=0 // pred_region
    _
  $region9: #{forward.1} parent=0 // pred_fallthru
    _
  // Predicated region
  $region10: #{forward.1} parent=0 // pred_check
    _
  $region11: #{forward.1} parent=0 // pred_check_branch
    %18 = sbr.rel (0) target = $region13
  $region12: #{forward.1} parent=0 // pred_region
    _
  $region13: #{forward.1} parent=0 // pred_fallthru
    _
  // Predicated region
  $region14: #{forward.1} parent=0 // pred_check
    _
  $region15: #{forward.1} parent=0 // pred_check_branch
    %20 = sbr.rel (0) target = $region17
  $region16: #{forward.1} parent=0 // pred_region
    _
  $region17: #{forward.1} parent=0 // pred_fallthru
    _
  // Predicated region
  $region18: #{forward.1} parent=0 // pred_check
    _
  $region19: #{forward.1} parent=0 // pred_check_branch
    %22 = sbr.rel (0) target = $region21
  $region20: #{forward.1} parent=0 // pred_region
    _
  $region21: #{forward.1} parent=0 // pred_fallthru
    _
  // Predicated region
  $region22: #{forward.1} parent=0 // pred_check
    _
  $region23: #{forward.1} parent=0 // pred_check_branch
    %24 = sbr.rel (0) target = $region25
  $region24: #{forward.1} parent=0 // pred_region
    _
  $region25: #{forward.1} parent=0 // pred_fallthru
    _
  // Predicated region
  $region26: #{forward.1} parent=0 // pred_check
    _
  $region27: #{forward.1} parent=0 // pred_check_branch
    %26 = sbr.rel (0) target = $region29
  $region28: #{forward.1} parent=0 // pred_region
    _
  $region29: #{forward.1} parent=0 // pred_fallthru
    _
  // Predicated region
  $region30: #{forward.1} parent=0 // pred_check
    _
  $region31: #{forward.1} parent=0 // pred_check_branch
    %28 = sbr.rel (0) target = $region33
  $region32: #{forward.1} parent=0 // pred_region
    _
  $region33: #{forward.1} parent=0 // pred_fallthru
    _
  %v29 = vld [vmem:[%s0] sm:$0xff]
  %v30 = vlaneseq
  %v31 = vshrl.u32 %v30, 7
  %v32 = vadd.s32 %v31, 8
  %v33 = vperm.slane %v29, 0
  %v34 = vperm.slane %v29, 1
  %v35 = vperm.slane %v29, 2
  %v36 = vperm.slane %v29, 3
  %v37 = vperm.slane %v29, 4
  %v38 = vperm.slane %v29, 5
  %v39 = vperm.slane %v29, 6
  %v40 = vperm.slane %v29, 7
  %vm41 = vcmp.eq.s32.totalorder %v31, %v33
  %vm42 = vcmp.eq.s32.totalorder %v31, %v34
  %vm43 = vcmp.eq.s32.totalorder %v31, %v35
  %vm44 = vcmp.eq.s32.totalorder %v31, %v36
  %vm45 = vcmp.eq.s32.totalorder %v31, %v37
  %vm46 = vcmp.eq.s32.totalorder %v31, %v38
  %vm47 = vcmp.eq.s32.totalorder %v31, %v39
  %vm48 = vcmp.eq.s32.totalorder %v31, %v40
  %vm49 = vcmp.eq.s32.totalorder %v32, %v33
  %vm50 = vcmp.eq.s32.totalorder %v32, %v34
  %vm51 = vcmp.eq.s32.totalorder %v32, %v35
  %vm52 = vcmp.eq.s32.totalorder %v32, %v36
  %vm53 = vcmp.eq.s32.totalorder %v32, %v37
  %vm54 = vcmp.eq.s32.totalorder %v32, %v38
  %vm55 = vcmp.eq.s32.totalorder %v32, %v39
  %vm56 = vcmp.eq.s32.totalorder %v32, %v40
  %vm57 = vcmp.eq.s32.totalorder %v31, 10
  %vm58 = vcmp.eq.s32.totalorder %v32, 10
  %vm59 = vmor %vm41, %vm57
  %vm60 = vmor %vm42, %vm57
  %vm61 = vmor %vm43, %vm57
  %vm62 = vmor %vm44, %vm57
  %vm63 = vmor %vm45, %vm57
  %vm64 = vmor %vm46, %vm57
  %vm65 = vmor %vm47, %vm57
  %vm66 = vmor %vm48, %vm57
  %vm67 = vmor %vm49, %vm58
  %vm68 = vmor %vm50, %vm58
  %vm69 = vmor %vm51, %vm58
  %vm70 = vmor %vm52, %vm58
  %vm71 = vmor %vm53, %vm58
  %vm72 = vmor %vm54, %vm58
  %vm73 = vmor %vm55, %vm58
  %vm74 = vmor %vm56, %vm58
  %v75 = vsel %vm59, 1, 0
  %v76 = vsel %vm60, 1, 0
  %v77 = vsel %vm61, 1, 0
  %v78 = vsel %vm62, 1, 0
  %v79 = vsel %vm63, 1, 0
  %v80 = vsel %vm64, 1, 0
  %v81 = vsel %vm65, 1, 0
  %v82 = vsel %vm66, 1, 0
  %v83 = vsel %vm67, 1, 0
  %v84 = vsel %vm68, 1, 0
  %v85 = vsel %vm69, 1, 0
  %v86 = vsel %vm70, 1, 0
  %v87 = vsel %vm71, 1, 0
  %v88 = vsel %vm72, 1, 0
  %v89 = vsel %vm73, 1, 0
  %v90 = vsel %vm74, 1, 0
  %v91 = vcvt.s32.f32 %v75
  %v92 = vcvt.s32.f32 %v76
  %v93 = vcvt.s32.f32 %v77
  %v94 = vcvt.s32.f32 %v78
  %v95 = vcvt.s32.f32 %v79
  %v96 = vcvt.s32.f32 %v80
  %v97 = vcvt.s32.f32 %v81
  %v98 = vcvt.s32.f32 %v82
  %v99 = vcvt.s32.f32 %v83
  %v100 = vcvt.s32.f32 %v84
  %v101 = vcvt.s32.f32 %v85
  %v102 = vcvt.s32.f32 %v86
  %v103 = vcvt.s32.f32 %v87
  %v104 = vcvt.s32.f32 %v88
  %v105 = vcvt.s32.f32 %v89
  %v106 = vcvt.s32.f32 %v90
  %v107 = vld [vmem:[%s1] sm:$0xff]
  %v108 = vld [vmem:[%s1 + $0x8] sm:$0xff]
  %v109 = vld [vmem:[%s1 + $0x10] sm:$0xff]
  %v110 = vld [vmem:[%s1 + $0x18] sm:$0xff]
  %v111 = vld [vmem:[%s1 + $0x20] sm:$0xff]
  %v112 = vld [vmem:[%s1 + $0x28] sm:$0xff]
  %v113 = vld [vmem:[%s1 + $0x30] sm:$0xff]
  %v114 = vld [vmem:[%s1 + $0x38] sm:$0xff]
  %v115 = vld [vmem:[%s1 + $0x40] sm:$0xff]
  %v116 = vld [vmem:[%s1 + $0x48] sm:$0xff]
  %v117 = vld [vmem:[%s1 + $0x50] sm:$0xff]
  %v118 = vld [vmem:[%s1 + $0x58] sm:$0xff]
  %v119 = vld [vmem:[%s1 + $0x60] sm:$0xff]
  %v120 = vld [vmem:[%s1 + $0x68] sm:$0xff]
  %v121 = vld [vmem:[%s1 + $0x70] sm:$0xff]
  %v122 = vld [vmem:[%s1 + $0x78] sm:$0xff]
  %vm123 = vcmask 89088
  %v125 = vsel %vm123, %v107, 0
  %v128 = vsel %vm123, %v108, 0
  %v131 = vsel %vm123, %v109, 0
  %v134 = vsel %vm123, %v110, 0
  %v137 = vsel %vm123, %v111, 0
  %v140 = vsel %vm123, %v112, 0
  %v143 = vsel %vm123, %v113, 0
  %v146 = vsel %vm123, %v114, 0
  %v149 = vsel %vm123, %v115, 0
  %v152 = vsel %vm123, %v116, 0
  %v155 = vsel %vm123, %v117, 0
  %v158 = vsel %vm123, %v118, 0
  %v161 = vsel %vm123, %v119, 0
  %v164 = vsel %vm123, %v120, 0
  %v167 = vsel %vm123, %v121, 0
  %v170 = vsel %vm123, %v122, 0
  %vm172 = vcmask 1042432
  %v174 = vsel %vm172, %v99, 0
  %v177 = vsel %vm172, %v100, 0
  %v180 = vsel %vm172, %v101, 0
  %v183 = vsel %vm172, %v102, 0
  %v186 = vsel %vm172, %v103, 0
  %v189 = vsel %vm172, %v104, 0
  %v192 = vsel %vm172, %v105, 0
  %v195 = vsel %vm172, %v106, 0
  %197 = vmatpush.msra.mxu0 0.0
  %198 = vmatpush.msra.mxu0 0.0
  %199 = vmatpush.msra.mxu0 0.0
  %200 = vmatpush.msra.mxu0 0.0
  %201 = vmatpush.msra.mxu0 0.0
  %202 = vmatpush.msra.mxu0 0.0
  %203 = vmatpush.msra.mxu0 0.0
  %204 = vmatpush.msra.mxu0 0.0
  %205 = vmatpush.msra.mxu0 0.0
  %206 = vmatpush.msra.mxu0 0.0
  %207 = vmatpush.msra.mxu0 0.0
  %208 = vmatpush.msra.mxu0 0.0
  %209 = vmatpush.msra.mxu0 0.0
  %210 = vmatpush.msra.mxu0 0.0
  %211 = vmatpush.msra.mxu0 %v174
  %212 = vmatpush.msra.mxu0 %v91
  %213 = vmatmul.f32.gmra.mxu0 %v125
  %v214 = vpop.f32.mrf.mxu0
  %v215 = vadd.f32 0.0, %v214
  %216 = vmatmul.f32.gmra.mxu0 %v128
  %v217 = vpop.f32.mrf.mxu0
  %v218 = vadd.f32 0.0, %v217
  %219 = vmatmul.f32.gmra.mxu0 %v131
  %v220 = vpop.f32.mrf.mxu0
  %v221 = vadd.f32 0.0, %v220
  %222 = vmatmul.f32.gmra.mxu0 %v134
  %v223 = vpop.f32.mrf.mxu0
  %v224 = vadd.f32 0.0, %v223
  %225 = vmatmul.f32.gmra.mxu0 %v137
  %v226 = vpop.f32.mrf.mxu0
  %v227 = vadd.f32 0.0, %v226
  %228 = vmatmul.f32.gmra.mxu0 %v140
  %v229 = vpop.f32.mrf.mxu0
  %v230 = vadd.f32 0.0, %v229
  %231 = vmatmul.f32.gmra.mxu0 %v143
  %v232 = vpop.f32.mrf.mxu0
  %v233 = vadd.f32 0.0, %v232
  %234 = vmatmul.f32.gmra.mxu0 %v146
  %v235 = vpop.f32.mrf.mxu0
  %v236 = vadd.f32 0.0, %v235
  %237 = vmatmul.f32.gmra.mxu0 %v149
  %v238 = vpop.f32.mrf.mxu0
  %239 = vmatmul.f32.gmra.mxu0 %v152
  %v240 = vpop.f32.mrf.mxu0
  %241 = vmatmul.f32.gmra.mxu0 %v155
  %v242 = vpop.f32.mrf.mxu0
  %243 = vmatmul.f32.gmra.mxu0 %v158
  %v244 = vpop.f32.mrf.mxu0
  %245 = vmatmul.f32.gmra.mxu0 %v161
  %v246 = vpop.f32.mrf.mxu0
  %247 = vmatmul.f32.gmra.mxu0 %v164
  %v248 = vpop.f32.mrf.mxu0
  %249 = vmatmul.f32.gmra.mxu0 %v167
  %v250 = vpop.f32.mrf.mxu0
  %251 = vmatmul.f32.gmra.mxu0 %v170
  %v252 = vpop.f32.mrf.mxu0
  %253 = vdwg.mxu0
  %254 = vmatpush.msra.mxu0 0.0
  %255 = vmatpush.msra.mxu0 0.0
  %256 = vmatpush.msra.mxu0 0.0
  %257 = vmatpush.msra.mxu0 0.0
  %258 = vmatpush.msra.mxu0 0.0
  %259 = vmatpush.msra.mxu0 0.0
  %260 = vmatpush.msra.mxu0 0.0
  %261 = vmatpush.msra.mxu0 0.0
  %262 = vmatpush.msra.mxu0 0.0
  %263 = vmatpush.msra.mxu0 0.0
  %264 = vmatpush.msra.mxu0 0.0
  %265 = vmatpush.msra.mxu0 0.0
  %266 = vmatpush.msra.mxu0 0.0
  %267 = vmatpush.msra.mxu0 0.0
  %268 = vmatpush.msra.mxu0 %v177
  %269 = vmatpush.msra.mxu0 %v92
  %270 = vmatmul.f32.gmra.mxu0 %v125
  %v271 = vpop.f32.mrf.mxu0
  %v272 = vadd.f32 0.0, %v271
  %273 = vmatmul.f32.gmra.mxu0 %v128
  %v274 = vpop.f32.mrf.mxu0
  %v275 = vadd.f32 0.0, %v274
  %276 = vmatmul.f32.gmra.mxu0 %v131
  %v277 = vpop.f32.mrf.mxu0
  %v278 = vadd.f32 0.0, %v277
  %279 = vmatmul.f32.gmra.mxu0 %v134
  %v280 = vpop.f32.mrf.mxu0
  %v281 = vadd.f32 0.0, %v280
  %282 = vmatmul.f32.gmra.mxu0 %v137
  %v283 = vpop.f32.mrf.mxu0
  %v284 = vadd.f32 0.0, %v283
  %285 = vmatmul.f32.gmra.mxu0 %v140
  %v286 = vpop.f32.mrf.mxu0
  %v287 = vadd.f32 0.0, %v286
  %288 = vmatmul.f32.gmra.mxu0 %v143
  %v289 = vpop.f32.mrf.mxu0
  %v290 = vadd.f32 0.0, %v289
  %291 = vmatmul.f32.gmra.mxu0 %v146
  %v292 = vpop.f32.mrf.mxu0
  %v293 = vadd.f32 0.0, %v292
  %294 = vmatmul.f32.gmra.mxu0 %v149
  %v295 = vpop.f32.mrf.mxu0
  %296 = vmatmul.f32.gmra.mxu0 %v152
  %v297 = vpop.f32.mrf.mxu0
  %298 = vmatmul.f32.gmra.mxu0 %v155
  %v299 = vpop.f32.mrf.mxu0
  %300 = vmatmul.f32.gmra.mxu0 %v158
  %v301 = vpop.f32.mrf.mxu0
  %302 = vmatmul.f32.gmra.mxu0 %v161
  %v303 = vpop.f32.mrf.mxu0
  %304 = vmatmul.f32.gmra.mxu0 %v164
  %v305 = vpop.f32.mrf.mxu0
  %306 = vmatmul.f32.gmra.mxu0 %v167
  %v307 = vpop.f32.mrf.mxu0
  %308 = vmatmul.f32.gmra.mxu0 %v170
  %v309 = vpop.f32.mrf.mxu0
  %310 = vdwg.mxu0
  %311 = vmatpush.msra.mxu0 0.0
  %312 = vmatpush.msra.mxu0 0.0
  %313 = vmatpush.msra.mxu0 0.0
  %314 = vmatpush.msra.mxu0 0.0
  %315 = vmatpush.msra.mxu0 0.0
  %316 = vmatpush.msra.mxu0 0.0
  %317 = vmatpush.msra.mxu0 0.0
  %318 = vmatpush.msra.mxu0 0.0
  %319 = vmatpush.msra.mxu0 0.0
  %320 = vmatpush.msra.mxu0 0.0
  %321 = vmatpush.msra.mxu0 0.0
  %322 = vmatpush.msra.mxu0 0.0
  %323 = vmatpush.msra.mxu0 0.0
  %324 = vmatpush.msra.mxu0 0.0
  %325 = vmatpush.msra.mxu0 %v180
  %326 = vmatpush.msra.mxu0 %v93
  %327 = vmatmul.f32.gmra.mxu0 %v125
  %v328 = vpop.f32.mrf.mxu0
  %v329 = vadd.f32 0.0, %v328
  %330 = vmatmul.f32.gmra.mxu0 %v128
  %v331 = vpop.f32.mrf.mxu0
  %v332 = vadd.f32 0.0, %v331
  %333 = vmatmul.f32.gmra.mxu0 %v131
  %v334 = vpop.f32.mrf.mxu0
  %v335 = vadd.f32 0.0, %v334
  %336 = vmatmul.f32.gmra.mxu0 %v134
  %v337 = vpop.f32.mrf.mxu0
  %v338 = vadd.f32 0.0, %v337
  %339 = vmatmul.f32.gmra.mxu0 %v137
  %v340 = vpop.f32.mrf.mxu0
  %v341 = vadd.f32 0.0, %v340
  %342 = vmatmul.f32.gmra.mxu0 %v140
  %v343 = vpop.f32.mrf.mxu0
  %v344 = vadd.f32 0.0, %v343
  %345 = vmatmul.f32.gmra.mxu0 %v143
  %v346 = vpop.f32.mrf.mxu0
  %v347 = vadd.f32 0.0, %v346
  %348 = vmatmul.f32.gmra.mxu0 %v146
  %v349 = vpop.f32.mrf.mxu0
  %v350 = vadd.f32 0.0, %v349
  %351 = vmatmul.f32.gmra.mxu0 %v149
  %v352 = vpop.f32.mrf.mxu0
  %353 = vmatmul.f32.gmra.mxu0 %v152
  %v354 = vpop.f32.mrf.mxu0
  %355 = vmatmul.f32.gmra.mxu0 %v155
  %v356 = vpop.f32.mrf.mxu0
  %357 = vmatmul.f32.gmra.mxu0 %v158
  %v358 = vpop.f32.mrf.mxu0
  %359 = vmatmul.f32.gmra.mxu0 %v161
  %v360 = vpop.f32.mrf.mxu0
  %361 = vmatmul.f32.gmra.mxu0 %v164
  %v362 = vpop.f32.mrf.mxu0
  %363 = vmatmul.f32.gmra.mxu0 %v167
  %v364 = vpop.f32.mrf.mxu0
  %365 = vmatmul.f32.gmra.mxu0 %v170
  %v366 = vpop.f32.mrf.mxu0
  %367 = vdwg.mxu0
  %368 = vmatpush.msra.mxu0 0.0
  %369 = vmatpush.msra.mxu0 0.0
  %370 = vmatpush.msra.mxu0 0.0
  %371 = vmatpush.msra.mxu0 0.0
  %372 = vmatpush.msra.mxu0 0.0
  %373 = vmatpush.msra.mxu0 0.0
  %374 = vmatpush.msra.mxu0 0.0
  %375 = vmatpush.msra.mxu0 0.0
  %376 = vmatpush.msra.mxu0 0.0
  %377 = vmatpush.msra.mxu0 0.0
  %378 = vmatpush.msra.mxu0 0.0
  %379 = vmatpush.msra.mxu0 0.0
  %380 = vmatpush.msra.mxu0 0.0
  %381 = vmatpush.msra.mxu0 0.0
  %382 = vmatpush.msra.mxu0 %v183
  %383 = vmatpush.msra.mxu0 %v94
  %384 = vmatmul.f32.gmra.mxu0 %v125
  %v385 = vpop.f32.mrf.mxu0
  %v386 = vadd.f32 0.0, %v385
  %387 = vmatmul.f32.gmra.mxu0 %v128
  %v388 = vpop.f32.mrf.mxu0
  %v389 = vadd.f32 0.0, %v388
  %390 = vmatmul.f32.gmra.mxu0 %v131
  %v391 = vpop.f32.mrf.mxu0
  %v392 = vadd.f32 0.0, %v391
  %393 = vmatmul.f32.gmra.mxu0 %v134
  %v394 = vpop.f32.mrf.mxu0
  %v395 = vadd.f32 0.0, %v394
  %396 = vmatmul.f32.gmra.mxu0 %v137
  %v397 = vpop.f32.mrf.mxu0
  %v398 = vadd.f32 0.0, %v397
  %399 = vmatmul.f32.gmra.mxu0 %v140
  %v400 = vpop.f32.mrf.mxu0
  %v401 = vadd.f32 0.0, %v400
  %402 = vmatmul.f32.gmra.mxu0 %v143
  %v403 = vpop.f32.mrf.mxu0
  %v404 = vadd.f32 0.0, %v403
  %405 = vmatmul.f32.gmra.mxu0 %v146
  %v406 = vpop.f32.mrf.mxu0
  %v407 = vadd.f32 0.0, %v406
  %408 = vmatmul.f32.gmra.mxu0 %v149
  %v409 = vpop.f32.mrf.mxu0
  %410 = vmatmul.f32.gmra.mxu0 %v152
  %v411 = vpop.f32.mrf.mxu0
  %412 = vmatmul.f32.gmra.mxu0 %v155
  %v413 = vpop.f32.mrf.mxu0
  %414 = vmatmul.f32.gmra.mxu0 %v158
  %v415 = vpop.f32.mrf.mxu0
  %416 = vmatmul.f32.gmra.mxu0 %v161
  %v417 = vpop.f32.mrf.mxu0
  %418 = vmatmul.f32.gmra.mxu0 %v164
  %v419 = vpop.f32.mrf.mxu0
  %420 = vmatmul.f32.gmra.mxu0 %v167
  %v421 = vpop.f32.mrf.mxu0
  %422 = vmatmul.f32.gmra.mxu0 %v170
  %v423 = vpop.f32.mrf.mxu0
  %424 = vdwg.mxu0
  %425 = vmatpush.msra.mxu0 0.0
  %426 = vmatpush.msra.mxu0 0.0
  %427 = vmatpush.msra.mxu0 0.0
  %428 = vmatpush.msra.mxu0 0.0
  %429 = vmatpush.msra.mxu0 0.0
  %430 = vmatpush.msra.mxu0 0.0
  %431 = vmatpush.msra.mxu0 0.0
  %432 = vmatpush.msra.mxu0 0.0
  %433 = vmatpush.msra.mxu0 0.0
  %434 = vmatpush.msra.mxu0 0.0
  %435 = vmatpush.msra.mxu0 0.0
  %436 = vmatpush.msra.mxu0 0.0
  %437 = vmatpush.msra.mxu0 0.0
  %438 = vmatpush.msra.mxu0 0.0
  %439 = vmatpush.msra.mxu0 %v186
  %440 = vmatpush.msra.mxu0 %v95
  %441 = vmatmul.f32.gmra.mxu0 %v125
  %v442 = vpop.f32.mrf.mxu0
  %v443 = vadd.f32 0.0, %v442
  %444 = vmatmul.f32.gmra.mxu0 %v128
  %v445 = vpop.f32.mrf.mxu0
  %v446 = vadd.f32 0.0, %v445
  %447 = vmatmul.f32.gmra.mxu0 %v131
  %v448 = vpop.f32.mrf.mxu0
  %v449 = vadd.f32 0.0, %v448
  %450 = vmatmul.f32.gmra.mxu0 %v134
  %v451 = vpop.f32.mrf.mxu0
  %v452 = vadd.f32 0.0, %v451
  %453 = vmatmul.f32.gmra.mxu0 %v137
  %v454 = vpop.f32.mrf.mxu0
  %v455 = vadd.f32 0.0, %v454
  %456 = vmatmul.f32.gmra.mxu0 %v140
  %v457 = vpop.f32.mrf.mxu0
  %v458 = vadd.f32 0.0, %v457
  %459 = vmatmul.f32.gmra.mxu0 %v143
  %v460 = vpop.f32.mrf.mxu0
  %v461 = vadd.f32 0.0, %v460
  %462 = vmatmul.f32.gmra.mxu0 %v146
  %v463 = vpop.f32.mrf.mxu0
  %v464 = vadd.f32 0.0, %v463
  %465 = vmatmul.f32.gmra.mxu0 %v149
  %v466 = vpop.f32.mrf.mxu0
  %467 = vmatmul.f32.gmra.mxu0 %v152
  %v468 = vpop.f32.mrf.mxu0
  %469 = vmatmul.f32.gmra.mxu0 %v155
  %v470 = vpop.f32.mrf.mxu0
  %471 = vmatmul.f32.gmra.mxu0 %v158
  %v472 = vpop.f32.mrf.mxu0
  %473 = vmatmul.f32.gmra.mxu0 %v161
  %v474 = vpop.f32.mrf.mxu0
  %475 = vmatmul.f32.gmra.mxu0 %v164
  %v476 = vpop.f32.mrf.mxu0
  %477 = vmatmul.f32.gmra.mxu0 %v167
  %v478 = vpop.f32.mrf.mxu0
  %479 = vmatmul.f32.gmra.mxu0 %v170
  %v480 = vpop.f32.mrf.mxu0
  %481 = vdwg.mxu0
  %482 = vmatpush.msra.mxu0 0.0
  %483 = vmatpush.msra.mxu0 0.0
  %484 = vmatpush.msra.mxu0 0.0
  %485 = vmatpush.msra.mxu0 0.0
  %486 = vmatpush.msra.mxu0 0.0
  %487 = vmatpush.msra.mxu0 0.0
  %488 = vmatpush.msra.mxu0 0.0
  %489 = vmatpush.msra.mxu0 0.0
  %490 = vmatpush.msra.mxu0 0.0
  %491 = vmatpush.msra.mxu0 0.0
  %492 = vmatpush.msra.mxu0 0.0
  %493 = vmatpush.msra.mxu0 0.0
  %494 = vmatpush.msra.mxu0 0.0
  %495 = vmatpush.msra.mxu0 0.0
  %496 = vmatpush.msra.mxu0 %v189
  %497 = vmatpush.msra.mxu0 %v96
  %498 = vmatmul.f32.gmra.mxu0 %v125
  %v499 = vpop.f32.mrf.mxu0
  %v500 = vadd.f32 0.0, %v499
  %501 = vmatmul.f32.gmra.mxu0 %v128
  %v502 = vpop.f32.mrf.mxu0
  %v503 = vadd.f32 0.0, %v502
  %504 = vmatmul.f32.gmra.mxu0 %v131
  %v505 = vpop.f32.mrf.mxu0
  %v506 = vadd.f32 0.0, %v505
  %507 = vmatmul.f32.gmra.mxu0 %v134
  %v508 = vpop.f32.mrf.mxu0
  %v509 = vadd.f32 0.0, %v508
  %510 = vmatmul.f32.gmra.mxu0 %v137
  %v511 = vpop.f32.mrf.mxu0
  %v512 = vadd.f32 0.0, %v511
  %513 = vmatmul.f32.gmra.mxu0 %v140
  %v514 = vpop.f32.mrf.mxu0
  %v515 = vadd.f32 0.0, %v514
  %516 = vmatmul.f32.gmra.mxu0 %v143
  %v517 = vpop.f32.mrf.mxu0
  %v518 = vadd.f32 0.0, %v517
  %519 = vmatmul.f32.gmra.mxu0 %v146
  %v520 = vpop.f32.mrf.mxu0
  %v521 = vadd.f32 0.0, %v520
  %522 = vmatmul.f32.gmra.mxu0 %v149
  %v523 = vpop.f32.mrf.mxu0
  %524 = vmatmul.f32.gmra.mxu0 %v152
  %v525 = vpop.f32.mrf.mxu0
  %526 = vmatmul.f32.gmra.mxu0 %v155
  %v527 = vpop.f32.mrf.mxu0
  %528 = vmatmul.f32.gmra.mxu0 %v158
  %v529 = vpop.f32.mrf.mxu0
  %530 = vmatmul.f32.gmra.mxu0 %v161
  %v531 = vpop.f32.mrf.mxu0
  %532 = vmatmul.f32.gmra.mxu0 %v164
  %v533 = vpop.f32.mrf.mxu0
  %534 = vmatmul.f32.gmra.mxu0 %v167
  %v535 = vpop.f32.mrf.mxu0
  %536 = vmatmul.f32.gmra.mxu0 %v170
  %v537 = vpop.f32.mrf.mxu0
  %538 = vdwg.mxu0
  %539 = vmatpush.msra.mxu0 0.0
  %540 = vmatpush.msra.mxu0 0.0
  %541 = vmatpush.msra.mxu0 0.0
  %542 = vmatpush.msra.mxu0 0.0
  %543 = vmatpush.msra.mxu0 0.0
  %544 = vmatpush.msra.mxu0 0.0
  %545 = vmatpush.msra.mxu0 0.0
  %546 = vmatpush.msra.mxu0 0.0
  %547 = vmatpush.msra.mxu0 0.0
  %548 = vmatpush.msra.mxu0 0.0
  %549 = vmatpush.msra.mxu0 0.0
  %550 = vmatpush.msra.mxu0 0.0
  %551 = vmatpush.msra.mxu0 0.0
  %552 = vmatpush.msra.mxu0 0.0
  %553 = vmatpush.msra.mxu0 %v192
  %554 = vmatpush.msra.mxu0 %v97
  %555 = vmatmul.f32.gmra.mxu0 %v125
  %v556 = vpop.f32.mrf.mxu0
  %v557 = vadd.f32 0.0, %v556
  %558 = vmatmul.f32.gmra.mxu0 %v128
  %v559 = vpop.f32.mrf.mxu0
  %v560 = vadd.f32 0.0, %v559
  %561 = vmatmul.f32.gmra.mxu0 %v131
  %v562 = vpop.f32.mrf.mxu0
  %v563 = vadd.f32 0.0, %v562
  %564 = vmatmul.f32.gmra.mxu0 %v134
  %v565 = vpop.f32.mrf.mxu0
  %v566 = vadd.f32 0.0, %v565
  %567 = vmatmul.f32.gmra.mxu0 %v137
  %v568 = vpop.f32.mrf.mxu0
  %v569 = vadd.f32 0.0, %v568
  %570 = vmatmul.f32.gmra.mxu0 %v140
  %v571 = vpop.f32.mrf.mxu0
  %v572 = vadd.f32 0.0, %v571
  %573 = vmatmul.f32.gmra.mxu0 %v143
  %v574 = vpop.f32.mrf.mxu0
  %v575 = vadd.f32 0.0, %v574
  %576 = vmatmul.f32.gmra.mxu0 %v146
  %v577 = vpop.f32.mrf.mxu0
  %v578 = vadd.f32 0.0, %v577
  %579 = vmatmul.f32.gmra.mxu0 %v149
  %v580 = vpop.f32.mrf.mxu0
  %581 = vmatmul.f32.gmra.mxu0 %v152
  %v582 = vpop.f32.mrf.mxu0
  %583 = vmatmul.f32.gmra.mxu0 %v155
  %v584 = vpop.f32.mrf.mxu0
  %585 = vmatmul.f32.gmra.mxu0 %v158
  %v586 = vpop.f32.mrf.mxu0
  %587 = vmatmul.f32.gmra.mxu0 %v161
  %v588 = vpop.f32.mrf.mxu0
  %589 = vmatmul.f32.gmra.mxu0 %v164
  %v590 = vpop.f32.mrf.mxu0
  %591 = vmatmul.f32.gmra.mxu0 %v167
  %v592 = vpop.f32.mrf.mxu0
  %593 = vmatmul.f32.gmra.mxu0 %v170
  %v594 = vpop.f32.mrf.mxu0
  %595 = vdwg.mxu0
  %596 = vmatpush.msra.mxu0 0.0
  %597 = vmatpush.msra.mxu0 0.0
  %598 = vmatpush.msra.mxu0 0.0
  %599 = vmatpush.msra.mxu0 0.0
  %600 = vmatpush.msra.mxu0 0.0
  %601 = vmatpush.msra.mxu0 0.0
  %602 = vmatpush.msra.mxu0 0.0
  %603 = vmatpush.msra.mxu0 0.0
  %604 = vmatpush.msra.mxu0 0.0
  %605 = vmatpush.msra.mxu0 0.0
  %606 = vmatpush.msra.mxu0 0.0
  %607 = vmatpush.msra.mxu0 0.0
  %608 = vmatpush.msra.mxu0 0.0
  %609 = vmatpush.msra.mxu0 0.0
  %610 = vmatpush.msra.mxu0 %v195
  %611 = vmatpush.msra.mxu0 %v98
  %612 = vmatmul.f32.gmra.mxu0 %v125
  %v613 = vpop.f32.mrf.mxu0
  %v614 = vadd.f32 0.0, %v613
  %615 = vmatmul.f32.gmra.mxu0 %v128
  %v616 = vpop.f32.mrf.mxu0
  %v617 = vadd.f32 0.0, %v616
  %618 = vmatmul.f32.gmra.mxu0 %v131
  %v619 = vpop.f32.mrf.mxu0
  %v620 = vadd.f32 0.0, %v619
  %621 = vmatmul.f32.gmra.mxu0 %v134
  %v622 = vpop.f32.mrf.mxu0
  %v623 = vadd.f32 0.0, %v622
  %624 = vmatmul.f32.gmra.mxu0 %v137
  %v625 = vpop.f32.mrf.mxu0
  %v626 = vadd.f32 0.0, %v625
  %627 = vmatmul.f32.gmra.mxu0 %v140
  %v628 = vpop.f32.mrf.mxu0
  %v629 = vadd.f32 0.0, %v628
  %630 = vmatmul.f32.gmra.mxu0 %v143
  %v631 = vpop.f32.mrf.mxu0
  %v632 = vadd.f32 0.0, %v631
  %633 = vmatmul.f32.gmra.mxu0 %v146
  %v634 = vpop.f32.mrf.mxu0
  %v635 = vadd.f32 0.0, %v634
  %636 = vmatmul.f32.gmra.mxu0 %v149
  %v637 = vpop.f32.mrf.mxu0
  %v638 = vadd.f32 0.0, %v637
  %639 = vmatmul.f32.gmra.mxu0 %v152
  %v640 = vpop.f32.mrf.mxu0
  %v641 = vadd.f32 0.0, %v640
  %642 = vmatmul.f32.gmra.mxu0 %v155
  %v643 = vpop.f32.mrf.mxu0
  %644 = vmatmul.f32.gmra.mxu0 %v158
  %v645 = vpop.f32.mrf.mxu0
  %646 = vmatmul.f32.gmra.mxu0 %v161
  %v647 = vpop.f32.mrf.mxu0
  %v648 = vadd.f32 0.0, %v647
  %649 = vmatmul.f32.gmra.mxu0 %v164
  %v650 = vpop.f32.mrf.mxu0
  %v651 = vadd.f32 0.0, %v650
  %652 = vmatmul.f32.gmra.mxu0 %v167
  %v653 = vpop.f32.mrf.mxu0
  %v654 = vadd.f32 0.0, %v653
  %655 = vmatmul.f32.gmra.mxu0 %v170
  %v656 = vpop.f32.mrf.mxu0
  %v657 = vadd.f32 0.0, %v656
  %658 = vdwg.mxu0
  %v659 = vld [vmem:[%s2] sm:$0xff]
  %v660 = vld [vmem:[%s2 + $0x8] sm:$0xff]
  %v661 = vld [vmem:[%s2 + $0x10] sm:$0xff]
  %v662 = vld [vmem:[%s2 + $0x18] sm:$0xff]
  %v663 = vld [vmem:[%s2 + $0x20] sm:$0xff]
  %v664 = vld [vmem:[%s2 + $0x28] sm:$0xff]
  %v665 = vld [vmem:[%s2 + $0x30] sm:$0xff]
  %v666 = vld [vmem:[%s2 + $0x38] sm:$0xff]
  %v667 = vxor.u32 %v215, 2147483648
  %v668 = vxor.u32 %v218, 2147483648
  %v669 = vxor.u32 %v221, 2147483648
  %v670 = vxor.u32 %v224, 2147483648
  %v671 = vxor.u32 %v227, 2147483648
  %v672 = vxor.u32 %v230, 2147483648
  %v673 = vmul.f32 %v667, 1.442695
  %v674 = vpow.pop %v673
  %v675 = vmul.f32 %v668, 1.442695
  %v676 = vpow.pop %v675
  %v677 = vmul.f32 %v669, 1.442695
  %v678 = vpow.pop %v677
  %v679 = vmul.f32 %v670, 1.442695
  %v680 = vpow.pop %v679
  %v681 = vmul.f32 %v671, 1.442695
  %v682 = vpow.pop %v681
  %v683 = vmul.f32 %v672, 1.442695
  %v684 = vpow.pop %v683
  %v685 = vadd.f32 %v674, 1.0
  %v686 = vadd.f32 %v676, 1.0
  %v687 = vadd.f32 %v678, 1.0
  %v688 = vadd.f32 %v680, 1.0
  %v689 = vadd.f32 %v682, 1.0
  %v690 = vadd.f32 %v684, 1.0
  %v691 = vrcp.pop %v685
  %v692 = vmul.f32 %v685, %v691
  %v693 = vsub.f32 1.0, %v692
  %v694 = vmul.f32 %v691, %v693
  %v695 = vadd.f32 %v691, %v694
  %vm696 = vweird.f32 %v685
  %vm697 = vweird.f32 %v691
  %vm698 = vmor %vm696, %vm697
  %v699 = vsel %vm698, %v691, %v695
  %v700 = vand.u32 2147483647, %v685
  %vm701 = vcmp.eq.f32.partialorder %v700, 8.507059e+37
  %v702 = vand.u32 %v685, 2147483648
  %v703 = vor.u32 1.1754944e-38, %v702
  %v704 = vsel %vm701, %v703, %v699
  %v705 = vmul.f32 1.0, %v704
  %v706 = vrcp.pop %v686
  %v707 = vmul.f32 %v686, %v706
  %v708 = vsub.f32 1.0, %v707
  %v709 = vmul.f32 %v706, %v708
  %v710 = vadd.f32 %v706, %v709
  %vm711 = vweird.f32 %v686
  %vm712 = vweird.f32 %v706
  %vm713 = vmor %vm711, %vm712
  %v714 = vsel %vm713, %v706, %v710
  %v715 = vand.u32 2147483647, %v686
  %vm716 = vcmp.eq.f32.partialorder %v715, 8.507059e+37
  %v717 = vand.u32 %v686, 2147483648
  %v718 = vor.u32 1.1754944e-38, %v717
  %v719 = vsel %vm716, %v718, %v714
  %v720 = vmul.f32 1.0, %v719
  %v721 = vrcp.pop %v687
  %v722 = vmul.f32 %v687, %v721
  %v723 = vsub.f32 1.0, %v722
  %v724 = vmul.f32 %v721, %v723
  %v725 = vadd.f32 %v721, %v724
  %vm726 = vweird.f32 %v687
  %vm727 = vweird.f32 %v721
  %vm728 = vmor %vm726, %vm727
  %v729 = vsel %vm728, %v721, %v725
  %v730 = vand.u32 2147483647, %v687
  %vm731 = vcmp.eq.f32.partialorder %v730, 8.507059e+37
  %v732 = vand.u32 %v687, 2147483648
  %v733 = vor.u32 1.1754944e-38, %v732
  %v734 = vsel %vm731, %v733, %v729
  %v735 = vmul.f32 1.0, %v734
  %v736 = vrcp.pop %v688
  %v737 = vmul.f32 %v688, %v736
  %v738 = vsub.f32 1.0, %v737
  %v739 = vmul.f32 %v736, %v738
  %v740 = vadd.f32 %v736, %v739
  %vm741 = vweird.f32 %v688
  %vm742 = vweird.f32 %v736
  %vm743 = vmor %vm741, %vm742
  %v744 = vsel %vm743, %v736, %v740
  %v745 = vand.u32 2147483647, %v688
  %vm746 = vcmp.eq.f32.partialorder %v745, 8.507059e+37
  %v747 = vand.u32 %v688, 2147483648
  %v748 = vor.u32 1.1754944e-38, %v747
  %v749 = vsel %vm746, %v748, %v744
  %v750 = vmul.f32 1.0, %v749
  %v751 = vrcp.pop %v689
  %v752 = vmul.f32 %v689, %v751
  %v753 = vsub.f32 1.0, %v752
  %v754 = vmul.f32 %v751, %v753
  %v755 = vadd.f32 %v751, %v754
  %vm756 = vweird.f32 %v689
  %vm757 = vweird.f32 %v751
  %vm758 = vmor %vm756, %vm757
  %v759 = vsel %vm758, %v751, %v755
  %v760 = vand.u32 2147483647, %v689
  %vm761 = vcmp.eq.f32.partialorder %v760, 8.507059e+37
  %v762 = vand.u32 %v689, 2147483648
  %v763 = vor.u32 1.1754944e-38, %v762
  %v764 = vsel %vm761, %v763, %v759
  %v765 = vmul.f32 1.0, %v764
  %v766 = vrcp.pop %v690
  %v767 = vmul.f32 %v690, %v766
  %v768 = vsub.f32 1.0, %v767
  %v769 = vmul.f32 %v766, %v768
  %v770 = vadd.f32 %v766, %v769
  %vm771 = vweird.f32 %v690
  %vm772 = vweird.f32 %v766
  %vm773 = vmor %vm771, %vm772
  %v774 = vsel %vm773, %v766, %v770
  %v775 = vand.u32 2147483647, %v690
  %vm776 = vcmp.eq.f32.partialorder %v775, 8.507059e+37
  %v777 = vand.u32 %v690, 2147483648
  %v778 = vor.u32 1.1754944e-38, %v777
  %v779 = vsel %vm776, %v778, %v774
  %v780 = vmul.f32 1.0, %v779
  %v781 = vtanh.pop %v233
  %v782 = vtanh.pop %v236
  %v783 = vmul.f32 %v735, 0.0
  %v784 = vmul.f32 %v750, 0.0
  %v785 = vmul.f32 %v705, %v781
  %v786 = vmul.f32 %v720, %v782
  %v787 = vadd.f32 %v783, %v785
  %v788 = vadd.f32 %v784, %v786
  %v789 = vtanh.pop %v787
  %v790 = vtanh.pop %v788
  %v791 = vmul.f32 %v765, %v789
  %v792 = vmul.f32 %v780, %v790
  %vm793 = vcmask 130048
  %v795 = vsel %vm793, %v659, 0
  %v798 = vsel %vm793, %v660, 0
  %v801 = vsel %vm793, %v661, 0
  %v804 = vsel %vm793, %v662, 0
  %v807 = vsel %vm793, %v663, 0
  %v810 = vsel %vm793, %v664, 0
  %v813 = vsel %vm793, %v665, 0
  %v816 = vsel %vm793, %v666, 0
  %818 = vmatpush.msra.mxu0 0.0
  %819 = vmatpush.msra.mxu0 0.0
  %820 = vmatpush.msra.mxu0 0.0
  %821 = vmatpush.msra.mxu0 0.0
  %822 = vmatpush.msra.mxu0 0.0
  %823 = vmatpush.msra.mxu0 0.0
  %824 = vmatpush.msra.mxu0 0.0
  %825 = vmatpush.msra.mxu0 0.0
  %826 = vmatpush.msra.mxu0 0.0
  %827 = vmatpush.msra.mxu0 0.0
  %828 = vmatpush.msra.mxu0 0.0
  %829 = vmatpush.msra.mxu0 0.0
  %830 = vmatpush.msra.mxu0 0.0
  %831 = vmatpush.msra.mxu0 0.0
  %832 = vmatpush.msra.mxu0 %v792
  %833 = vmatpush.msra.mxu0 %v791
  %834 = vmatmul.f32.gmra.mxu0 %v795
  %v835 = vpop.f32.mrf.mxu0
  %v836 = vadd.f32 0.0, %v835
  %837 = vmatmul.f32.gmra.mxu0 %v798
  %v838 = vpop.f32.mrf.mxu0
  %v839 = vadd.f32 0.0, %v838
  %840 = vmatmul.f32.gmra.mxu0 %v801
  %v841 = vpop.f32.mrf.mxu0
  %v842 = vadd.f32 0.0, %v841
  %843 = vmatmul.f32.gmra.mxu0 %v804
  %v844 = vpop.f32.mrf.mxu0
  %v845 = vadd.f32 0.0, %v844
  %846 = vmatmul.f32.gmra.mxu0 %v807
  %v847 = vpop.f32.mrf.mxu0
  %v848 = vadd.f32 0.0, %v847
  %849 = vmatmul.f32.gmra.mxu0 %v810
  %v850 = vpop.f32.mrf.mxu0
  %v851 = vadd.f32 0.0, %v850
  %852 = vmatmul.f32.gmra.mxu0 %v813
  %v853 = vpop.f32.mrf.mxu0
  %v854 = vadd.f32 0.0, %v853
  %855 = vmatmul.f32.gmra.mxu0 %v816
  %v856 = vpop.f32.mrf.mxu0
  %v857 = vadd.f32 0.0, %v856
  %858 = vdwg.mxu0
  %v859 = vadd.f32 %v272, %v836
  %v860 = vadd.f32 %v275, %v839
  %v861 = vadd.f32 %v278, %v842
  %v862 = vadd.f32 %v281, %v845
  %v863 = vadd.f32 %v284, %v848
  %v864 = vadd.f32 %v287, %v851
  %v865 = vadd.f32 %v290, %v854
  %v866 = vadd.f32 %v293, %v857
  %v867 = vxor.u32 %v859, 2147483648
  %v868 = vxor.u32 %v860, 2147483648
  %v869 = vxor.u32 %v861, 2147483648
  %v870 = vxor.u32 %v862, 2147483648
  %v871 = vxor.u32 %v863, 2147483648
  %v872 = vxor.u32 %v864, 2147483648
  %v873 = vmul.f32 %v867, 1.442695
  %v874 = vpow.pop %v873
  %v875 = vmul.f32 %v868, 1.442695
  %v876 = vpow.pop %v875
  %v877 = vmul.f32 %v869, 1.442695
  %v878 = vpow.pop %v877
  %v879 = vmul.f32 %v870, 1.442695
  %v880 = vpow.pop %v879
  %v881 = vmul.f32 %v871, 1.442695
  %v882 = vpow.pop %v881
  %v883 = vmul.f32 %v872, 1.442695
  %v884 = vpow.pop %v883
  %v885 = vadd.f32 %v874, 1.0
  %v886 = vadd.f32 %v876, 1.0
  %v887 = vadd.f32 %v878, 1.0
  %v888 = vadd.f32 %v880, 1.0
  %v889 = vadd.f32 %v882, 1.0
  %v890 = vadd.f32 %v884, 1.0
  %v891 = vrcp.pop %v885
  %v892 = vmul.f32 %v885, %v891
  %v893 = vsub.f32 1.0, %v892
  %v894 = vmul.f32 %v891, %v893
  %v895 = vadd.f32 %v891, %v894
  %vm896 = vweird.f32 %v885
  %vm897 = vweird.f32 %v891
  %vm898 = vmor %vm896, %vm897
  %v899 = vsel %vm898, %v891, %v895
  %v900 = vand.u32 2147483647, %v885
  %vm901 = vcmp.eq.f32.partialorder %v900, 8.507059e+37
  %v902 = vand.u32 %v885, 2147483648
  %v903 = vor.u32 1.1754944e-38, %v902
  %v904 = vsel %vm901, %v903, %v899
  %v905 = vmul.f32 1.0, %v904
  %v906 = vrcp.pop %v886
  %v907 = vmul.f32 %v886, %v906
  %v908 = vsub.f32 1.0, %v907
  %v909 = vmul.f32 %v906, %v908
  %v910 = vadd.f32 %v906, %v909
  %vm911 = vweird.f32 %v886
  %vm912 = vweird.f32 %v906
  %vm913 = vmor %vm911, %vm912
  %v914 = vsel %vm913, %v906, %v910
  %v915 = vand.u32 2147483647, %v886
  %vm916 = vcmp.eq.f32.partialorder %v915, 8.507059e+37
  %v917 = vand.u32 %v886, 2147483648
  %v918 = vor.u32 1.1754944e-38, %v917
  %v919 = vsel %vm916, %v918, %v914
  %v920 = vmul.f32 1.0, %v919
  %v921 = vrcp.pop %v887
  %v922 = vmul.f32 %v887, %v921
  %v923 = vsub.f32 1.0, %v922
  %v924 = vmul.f32 %v921, %v923
  %v925 = vadd.f32 %v921, %v924
  %vm926 = vweird.f32 %v887
  %vm927 = vweird.f32 %v921
  %vm928 = vmor %vm926, %vm927
  %v929 = vsel %vm928, %v921, %v925
  %v930 = vand.u32 2147483647, %v887
  %vm931 = vcmp.eq.f32.partialorder %v930, 8.507059e+37
  %v932 = vand.u32 %v887, 2147483648
  %v933 = vor.u32 1.1754944e-38, %v932
  %v934 = vsel %vm931, %v933, %v929
  %v935 = vmul.f32 1.0, %v934
  %v936 = vrcp.pop %v888
  %v937 = vmul.f32 %v888, %v936
  %v938 = vsub.f32 1.0, %v937
  %v939 = vmul.f32 %v936, %v938
  %v940 = vadd.f32 %v936, %v939
  %vm941 = vweird.f32 %v888
  %vm942 = vweird.f32 %v936
  %vm943 = vmor %vm941, %vm942
  %v944 = vsel %vm943, %v936, %v940
  %v945 = vand.u32 2147483647, %v888
  %vm946 = vcmp.eq.f32.partialorder %v945, 8.507059e+37
  %v947 = vand.u32 %v888, 2147483648
  %v948 = vor.u32 1.1754944e-38, %v947
  %v949 = vsel %vm946, %v948, %v944
  %v950 = vmul.f32 1.0, %v949
  %v951 = vrcp.pop %v889
  %v952 = vmul.f32 %v889, %v951
  %v953 = vsub.f32 1.0, %v952
  %v954 = vmul.f32 %v951, %v953
  %v955 = vadd.f32 %v951, %v954
  %vm956 = vweird.f32 %v889
  %vm957 = vweird.f32 %v951
  %vm958 = vmor %vm956, %vm957
  %v959 = vsel %vm958, %v951, %v955
  %v960 = vand.u32 2147483647, %v889
  %vm961 = vcmp.eq.f32.partialorder %v960, 8.507059e+37
  %v962 = vand.u32 %v889, 2147483648
  %v963 = vor.u32 1.1754944e-38, %v962
  %v964 = vsel %vm961, %v963, %v959
  %v965 = vmul.f32 1.0, %v964
  %v966 = vrcp.pop %v890
  %v967 = vmul.f32 %v890, %v966
  %v968 = vsub.f32 1.0, %v967
  %v969 = vmul.f32 %v966, %v968
  %v970 = vadd.f32 %v966, %v969
  %vm971 = vweird.f32 %v890
  %vm972 = vweird.f32 %v966
  %vm973 = vmor %vm971, %vm972
  %v974 = vsel %vm973, %v966, %v970
  %v975 = vand.u32 2147483647, %v890
  %vm976 = vcmp.eq.f32.partialorder %v975, 8.507059e+37
  %v977 = vand.u32 %v890, 2147483648
  %v978 = vor.u32 1.1754944e-38, %v977
  %v979 = vsel %vm976, %v978, %v974
  %v980 = vmul.f32 1.0, %v979
  %v981 = vtanh.pop %v865
  %v982 = vtanh.pop %v866
  %v983 = vmul.f32 %v935, %v787
  %v984 = vmul.f32 %v950, %v788
  %v985 = vmul.f32 %v905, %v981
  %v986 = vmul.f32 %v920, %v982
  %v987 = vadd.f32 %v983, %v985
  %v988 = vadd.f32 %v984, %v986
  %v989 = vtanh.pop %v987
  %v990 = vtanh.pop %v988
  %v991 = vmul.f32 %v965, %v989
  %v992 = vmul.f32 %v980, %v990
  %993 = vmatpush.msra.mxu0 0.0
  %994 = vmatpush.msra.mxu0 0.0
  %995 = vmatpush.msra.mxu0 0.0
  %996 = vmatpush.msra.mxu0 0.0
  %997 = vmatpush.msra.mxu0 0.0
  %998 = vmatpush.msra.mxu0 0.0
  %999 = vmatpush.msra.mxu0 0.0
  %1000 = vmatpush.msra.mxu0 0.0
  %1001 = vmatpush.msra.mxu0 0.0
  %1002 = vmatpush.msra.mxu0 0.0
  %1003 = vmatpush.msra.mxu0 0.0
  %1004 = vmatpush.msra.mxu0 0.0
  %1005 = vmatpush.msra.mxu0 0.0
  %1006 = vmatpush.msra.mxu0 0.0
  %1007 = vmatpush.msra.mxu0 %v992
  %1008 = vmatpush.msra.mxu0 %v991
  %1009 = vmatmul.f32.gmra.mxu0 %v795
  %v1010 = vpop.f32.mrf.mxu0
  %v1011 = vadd.f32 0.0, %v1010
  %1012 = vmatmul.f32.gmra.mxu0 %v798
  %v1013 = vpop.f32.mrf.mxu0
  %v1014 = vadd.f32 0.0, %v1013
  %1015 = vmatmul.f32.gmra.mxu0 %v801
  %v1016 = vpop.f32.mrf.mxu0
  %v1017 = vadd.f32 0.0, %v1016
  %1018 = vmatmul.f32.gmra.mxu0 %v804
  %v1019 = vpop.f32.mrf.mxu0
  %v1020 = vadd.f32 0.0, %v1019
  %1021 = vmatmul.f32.gmra.mxu0 %v807
  %v1022 = vpop.f32.mrf.mxu0
  %v1023 = vadd.f32 0.0, %v1022
  %1024 = vmatmul.f32.gmra.mxu0 %v810
  %v1025 = vpop.f32.mrf.mxu0
  %v1026 = vadd.f32 0.0, %v1025
  %1027 = vmatmul.f32.gmra.mxu0 %v813
  %v1028 = vpop.f32.mrf.mxu0
  %v1029 = vadd.f32 0.0, %v1028
  %1030 = vmatmul.f32.gmra.mxu0 %v816
  %v1031 = vpop.f32.mrf.mxu0
  %v1032 = vadd.f32 0.0, %v1031
  %1033 = vdwg.mxu0
  %v1034 = vadd.f32 %v329, %v1011
  %v1035 = vadd.f32 %v332, %v1014
  %v1036 = vadd.f32 %v335, %v1017
  %v1037 = vadd.f32 %v338, %v1020
  %v1038 = vadd.f32 %v341, %v1023
  %v1039 = vadd.f32 %v344, %v1026
  %v1040 = vadd.f32 %v347, %v1029
  %v1041 = vadd.f32 %v350, %v1032
  %v1042 = vxor.u32 %v1034, 2147483648
  %v1043 = vxor.u32 %v1035, 2147483648
  %v1044 = vxor.u32 %v1036, 2147483648
  %v1045 = vxor.u32 %v1037, 2147483648
  %v1046 = vxor.u32 %v1038, 2147483648
  %v1047 = vxor.u32 %v1039, 2147483648
  %v1048 = vmul.f32 %v1042, 1.442695
  %v1049 = vpow.pop %v1048
  %v1050 = vmul.f32 %v1043, 1.442695
  %v1051 = vpow.pop %v1050
  %v1052 = vmul.f32 %v1044, 1.442695
  %v1053 = vpow.pop %v1052
  %v1054 = vmul.f32 %v1045, 1.442695
  %v1055 = vpow.pop %v1054
  %v1056 = vmul.f32 %v1046, 1.442695
  %v1057 = vpow.pop %v1056
  %v1058 = vmul.f32 %v1047, 1.442695
  %v1059 = vpow.pop %v1058
  %v1060 = vadd.f32 %v1049, 1.0
  %v1061 = vadd.f32 %v1051, 1.0
  %v1062 = vadd.f32 %v1053, 1.0
  %v1063 = vadd.f32 %v1055, 1.0
  %v1064 = vadd.f32 %v1057, 1.0
  %v1065 = vadd.f32 %v1059, 1.0
  %v1066 = vrcp.pop %v1060
  %v1067 = vmul.f32 %v1060, %v1066
  %v1068 = vsub.f32 1.0, %v1067
  %v1069 = vmul.f32 %v1066, %v1068
  %v1070 = vadd.f32 %v1066, %v1069
  %vm1071 = vweird.f32 %v1060
  %vm1072 = vweird.f32 %v1066
  %vm1073 = vmor %vm1071, %vm1072
  %v1074 = vsel %vm1073, %v1066, %v1070
  %v1075 = vand.u32 2147483647, %v1060
  %vm1076 = vcmp.eq.f32.partialorder %v1075, 8.507059e+37
  %v1077 = vand.u32 %v1060, 2147483648
  %v1078 = vor.u32 1.1754944e-38, %v1077
  %v1079 = vsel %vm1076, %v1078, %v1074
  %v1080 = vmul.f32 1.0, %v1079
  %v1081 = vrcp.pop %v1061
  %v1082 = vmul.f32 %v1061, %v1081
  %v1083 = vsub.f32 1.0, %v1082
  %v1084 = vmul.f32 %v1081, %v1083
  %v1085 = vadd.f32 %v1081, %v1084
  %vm1086 = vweird.f32 %v1061
  %vm1087 = vweird.f32 %v1081
  %vm1088 = vmor %vm1086, %vm1087
  %v1089 = vsel %vm1088, %v1081, %v1085
  %v1090 = vand.u32 2147483647, %v1061
  %vm1091 = vcmp.eq.f32.partialorder %v1090, 8.507059e+37
  %v1092 = vand.u32 %v1061, 2147483648
  %v1093 = vor.u32 1.1754944e-38, %v1092
  %v1094 = vsel %vm1091, %v1093, %v1089
  %v1095 = vmul.f32 1.0, %v1094
  %v1096 = vrcp.pop %v1062
  %v1097 = vmul.f32 %v1062, %v1096
  %v1098 = vsub.f32 1.0, %v1097
  %v1099 = vmul.f32 %v1096, %v1098
  %v1100 = vadd.f32 %v1096, %v1099
  %vm1101 = vweird.f32 %v1062
  %vm1102 = vweird.f32 %v1096
  %vm1103 = vmor %vm1101, %vm1102
  %v1104 = vsel %vm1103, %v1096, %v1100
  %v1105 = vand.u32 2147483647, %v1062
  %vm1106 = vcmp.eq.f32.partialorder %v1105, 8.507059e+37
  %v1107 = vand.u32 %v1062, 2147483648
  %v1108 = vor.u32 1.1754944e-38, %v1107
  %v1109 = vsel %vm1106, %v1108, %v1104
  %v1110 = vmul.f32 1.0, %v1109
  %v1111 = vrcp.pop %v1063
  %v1112 = vmul.f32 %v1063, %v1111
  %v1113 = vsub.f32 1.0, %v1112
  %v1114 = vmul.f32 %v1111, %v1113
  %v1115 = vadd.f32 %v1111, %v1114
  %vm1116 = vweird.f32 %v1063
  %vm1117 = vweird.f32 %v1111
  %vm1118 = vmor %vm1116, %vm1117
  %v1119 = vsel %vm1118, %v1111, %v1115
  %v1120 = vand.u32 2147483647, %v1063
  %vm1121 = vcmp.eq.f32.partialorder %v1120, 8.507059e+37
  %v1122 = vand.u32 %v1063, 2147483648
  %v1123 = vor.u32 1.1754944e-38, %v1122
  %v1124 = vsel %vm1121, %v1123, %v1119
  %v1125 = vmul.f32 1.0, %v1124
  %v1126 = vrcp.pop %v1064
  %v1127 = vmul.f32 %v1064, %v1126
  %v1128 = vsub.f32 1.0, %v1127
  %v1129 = vmul.f32 %v1126, %v1128
  %v1130 = vadd.f32 %v1126, %v1129
  %vm1131 = vweird.f32 %v1064
  %vm1132 = vweird.f32 %v1126
  %vm1133 = vmor %vm1131, %vm1132
  %v1134 = vsel %vm1133, %v1126, %v1130
  %v1135 = vand.u32 2147483647, %v1064
  %vm1136 = vcmp.eq.f32.partialorder %v1135, 8.507059e+37
  %v1137 = vand.u32 %v1064, 2147483648
  %v1138 = vor.u32 1.1754944e-38, %v1137
  %v1139 = vsel %vm1136, %v1138, %v1134
  %v1140 = vmul.f32 1.0, %v1139
  %v1141 = vrcp.pop %v1065
  %v1142 = vmul.f32 %v1065, %v1141
  %v1143 = vsub.f32 1.0, %v1142
  %v1144 = vmul.f32 %v1141, %v1143
  %v1145 = vadd.f32 %v1141, %v1144
  %vm1146 = vweird.f32 %v1065
  %vm1147 = vweird.f32 %v1141
  %vm1148 = vmor %vm1146, %vm1147
  %v1149 = vsel %vm1148, %v1141, %v1145
  %v1150 = vand.u32 2147483647, %v1065
  %vm1151 = vcmp.eq.f32.partialorder %v1150, 8.507059e+37
  %v1152 = vand.u32 %v1065, 2147483648
  %v1153 = vor.u32 1.1754944e-38, %v1152
  %v1154 = vsel %vm1151, %v1153, %v1149
  %v1155 = vmul.f32 1.0, %v1154
  %v1156 = vtanh.pop %v1040
  %v1157 = vtanh.pop %v1041
  %v1158 = vmul.f32 %v1110, %v987
  %v1159 = vmul.f32 %v1125, %v988
  %v1160 = vmul.f32 %v1080, %v1156
  %v1161 = vmul.f32 %v1095, %v1157
  %v1162 = vadd.f32 %v1158, %v1160
  %v1163 = vadd.f32 %v1159, %v1161
  %v1164 = vtanh.pop %v1162
  %v1165 = vtanh.pop %v1163
  %v1166 = vmul.f32 %v1140, %v1164
  %v1167 = vmul.f32 %v1155, %v1165
  %1168 = vmatpush.msra.mxu0 0.0
  %1169 = vmatpush.msra.mxu0 0.0
  %1170 = vmatpush.msra.mxu0 0.0
  %1171 = vmatpush.msra.mxu0 0.0
  %1172 = vmatpush.msra.mxu0 0.0
  %1173 = vmatpush.msra.mxu0 0.0
  %1174 = vmatpush.msra.mxu0 0.0
  %1175 = vmatpush.msra.mxu0 0.0
  %1176 = vmatpush.msra.mxu0 0.0
  %1177 = vmatpush.msra.mxu0 0.0
  %1178 = vmatpush.msra.mxu0 0.0
  %1179 = vmatpush.msra.mxu0 0.0
  %1180 = vmatpush.msra.mxu0 0.0
  %1181 = vmatpush.msra.mxu0 0.0
  %1182 = vmatpush.msra.mxu0 %v1167
  %1183 = vmatpush.msra.mxu0 %v1166
  %1184 = vmatmul.f32.gmra.mxu0 %v795
  %v1185 = vpop.f32.mrf.mxu0
  %v1186 = vadd.f32 0.0, %v1185
  %1187 = vmatmul.f32.gmra.mxu0 %v798
  %v1188 = vpop.f32.mrf.mxu0
  %v1189 = vadd.f32 0.0, %v1188
  %1190 = vmatmul.f32.gmra.mxu0 %v801
  %v1191 = vpop.f32.mrf.mxu0
  %v1192 = vadd.f32 0.0, %v1191
  %1193 = vmatmul.f32.gmra.mxu0 %v804
  %v1194 = vpop.f32.mrf.mxu0
  %v1195 = vadd.f32 0.0, %v1194
  %1196 = vmatmul.f32.gmra.mxu0 %v807
  %v1197 = vpop.f32.mrf.mxu0
  %v1198 = vadd.f32 0.0, %v1197
  %1199 = vmatmul.f32.gmra.mxu0 %v810
  %v1200 = vpop.f32.mrf.mxu0
  %v1201 = vadd.f32 0.0, %v1200
  %1202 = vmatmul.f32.gmra.mxu0 %v813
  %v1203 = vpop.f32.mrf.mxu0
  %v1204 = vadd.f32 0.0, %v1203
  %1205 = vmatmul.f32.gmra.mxu0 %v816
  %v1206 = vpop.f32.mrf.mxu0
  %v1207 = vadd.f32 0.0, %v1206
  %1208 = vdwg.mxu0
  %v1209 = vadd.f32 %v386, %v1186
  %v1210 = vadd.f32 %v389, %v1189
  %v1211 = vadd.f32 %v392, %v1192
  %v1212 = vadd.f32 %v395, %v1195
  %v1213 = vadd.f32 %v398, %v1198
  %v1214 = vadd.f32 %v401, %v1201
  %v1215 = vadd.f32 %v404, %v1204
  %v1216 = vadd.f32 %v407, %v1207
  %v1217 = vxor.u32 %v1209, 2147483648
  %v1218 = vxor.u32 %v1210, 2147483648
  %v1219 = vxor.u32 %v1211, 2147483648
  %v1220 = vxor.u32 %v1212, 2147483648
  %v1221 = vxor.u32 %v1213, 2147483648
  %v1222 = vxor.u32 %v1214, 2147483648
  %v1223 = vmul.f32 %v1217, 1.442695
  %v1224 = vpow.pop %v1223
  %v1225 = vmul.f32 %v1218, 1.442695
  %v1226 = vpow.pop %v1225
  %v1227 = vmul.f32 %v1219, 1.442695
  %v1228 = vpow.pop %v1227
  %v1229 = vmul.f32 %v1220, 1.442695
  %v1230 = vpow.pop %v1229
  %v1231 = vmul.f32 %v1221, 1.442695
  %v1232 = vpow.pop %v1231
  %v1233 = vmul.f32 %v1222, 1.442695
  %v1234 = vpow.pop %v1233
  %v1235 = vadd.f32 %v1224, 1.0
  %v1236 = vadd.f32 %v1226, 1.0
  %v1237 = vadd.f32 %v1228, 1.0
  %v1238 = vadd.f32 %v1230, 1.0
  %v1239 = vadd.f32 %v1232, 1.0
  %v1240 = vadd.f32 %v1234, 1.0
  %v1241 = vrcp.pop %v1235
  %v1242 = vmul.f32 %v1235, %v1241
  %v1243 = vsub.f32 1.0, %v1242
  %v1244 = vmul.f32 %v1241, %v1243
  %v1245 = vadd.f32 %v1241, %v1244
  %vm1246 = vweird.f32 %v1235
  %vm1247 = vweird.f32 %v1241
  %vm1248 = vmor %vm1246, %vm1247
  %v1249 = vsel %vm1248, %v1241, %v1245
  %v1250 = vand.u32 2147483647, %v1235
  %vm1251 = vcmp.eq.f32.partialorder %v1250, 8.507059e+37
  %v1252 = vand.u32 %v1235, 2147483648
  %v1253 = vor.u32 1.1754944e-38, %v1252
  %v1254 = vsel %vm1251, %v1253, %v1249
  %v1255 = vmul.f32 1.0, %v1254
  %v1256 = vrcp.pop %v1236
  %v1257 = vmul.f32 %v1236, %v1256
  %v1258 = vsub.f32 1.0, %v1257
  %v1259 = vmul.f32 %v1256, %v1258
  %v1260 = vadd.f32 %v1256, %v1259
  %vm1261 = vweird.f32 %v1236
  %vm1262 = vweird.f32 %v1256
  %vm1263 = vmor %vm1261, %vm1262
  %v1264 = vsel %vm1263, %v1256, %v1260
  %v1265 = vand.u32 2147483647, %v1236
  %vm1266 = vcmp.eq.f32.partialorder %v1265, 8.507059e+37
  %v1267 = vand.u32 %v1236, 2147483648
  %v1268 = vor.u32 1.1754944e-38, %v1267
  %v1269 = vsel %vm1266, %v1268, %v1264
  %v1270 = vmul.f32 1.0, %v1269
  %v1271 = vrcp.pop %v1237
  %v1272 = vmul.f32 %v1237, %v1271
  %v1273 = vsub.f32 1.0, %v1272
  %v1274 = vmul.f32 %v1271, %v1273
  %v1275 = vadd.f32 %v1271, %v1274
  %vm1276 = vweird.f32 %v1237
  %vm1277 = vweird.f32 %v1271
  %vm1278 = vmor %vm1276, %vm1277
  %v1279 = vsel %vm1278, %v1271, %v1275
  %v1280 = vand.u32 2147483647, %v1237
  %vm1281 = vcmp.eq.f32.partialorder %v1280, 8.507059e+37
  %v1282 = vand.u32 %v1237, 2147483648
  %v1283 = vor.u32 1.1754944e-38, %v1282
  %v1284 = vsel %vm1281, %v1283, %v1279
  %v1285 = vmul.f32 1.0, %v1284
  %v1286 = vrcp.pop %v1238
  %v1287 = vmul.f32 %v1238, %v1286
  %v1288 = vsub.f32 1.0, %v1287
  %v1289 = vmul.f32 %v1286, %v1288
  %v1290 = vadd.f32 %v1286, %v1289
  %vm1291 = vweird.f32 %v1238
  %vm1292 = vweird.f32 %v1286
  %vm1293 = vmor %vm1291, %vm1292
  %v1294 = vsel %vm1293, %v1286, %v1290
  %v1295 = vand.u32 2147483647, %v1238
  %vm1296 = vcmp.eq.f32.partialorder %v1295, 8.507059e+37
  %v1297 = vand.u32 %v1238, 2147483648
  %v1298 = vor.u32 1.1754944e-38, %v1297
  %v1299 = vsel %vm1296, %v1298, %v1294
  %v1300 = vmul.f32 1.0, %v1299
  %v1301 = vrcp.pop %v1239
  %v1302 = vmul.f32 %v1239, %v1301
  %v1303 = vsub.f32 1.0, %v1302
  %v1304 = vmul.f32 %v1301, %v1303
  %v1305 = vadd.f32 %v1301, %v1304
  %vm1306 = vweird.f32 %v1239
  %vm1307 = vweird.f32 %v1301
  %vm1308 = vmor %vm1306, %vm1307
  %v1309 = vsel %vm1308, %v1301, %v1305
  %v1310 = vand.u32 2147483647, %v1239
  %vm1311 = vcmp.eq.f32.partialorder %v1310, 8.507059e+37
  %v1312 = vand.u32 %v1239, 2147483648
  %v1313 = vor.u32 1.1754944e-38, %v1312
  %v1314 = vsel %vm1311, %v1313, %v1309
  %v1315 = vmul.f32 1.0, %v1314
  %v1316 = vrcp.pop %v1240
  %v1317 = vmul.f32 %v1240, %v1316
  %v1318 = vsub.f32 1.0, %v1317
  %v1319 = vmul.f32 %v1316, %v1318
  %v1320 = vadd.f32 %v1316, %v1319
  %vm1321 = vweird.f32 %v1240
  %vm1322 = vweird.f32 %v1316
  %vm1323 = vmor %vm1321, %vm1322
  %v1324 = vsel %vm1323, %v1316, %v1320
  %v1325 = vand.u32 2147483647, %v1240
  %vm1326 = vcmp.eq.f32.partialorder %v1325, 8.507059e+37
  %v1327 = vand.u32 %v1240, 2147483648
  %v1328 = vor.u32 1.1754944e-38, %v1327
  %v1329 = vsel %vm1326, %v1328, %v1324
  %v1330 = vmul.f32 1.0, %v1329
  %v1331 = vtanh.pop %v1215
  %v1332 = vtanh.pop %v1216
  %v1333 = vmul.f32 %v1285, %v1162
  %v1334 = vmul.f32 %v1300, %v1163
  %v1335 = vmul.f32 %v1255, %v1331
  %v1336 = vmul.f32 %v1270, %v1332
  %v1337 = vadd.f32 %v1333, %v1335
  %v1338 = vadd.f32 %v1334, %v1336
  %v1339 = vtanh.pop %v1337
  %v1340 = vtanh.pop %v1338
  %v1341 = vmul.f32 %v1315, %v1339
  %v1342 = vmul.f32 %v1330, %v1340
  %1343 = vmatpush.msra.mxu0 0.0
  %1344 = vmatpush.msra.mxu0 0.0
  %1345 = vmatpush.msra.mxu0 0.0
  %1346 = vmatpush.msra.mxu0 0.0
  %1347 = vmatpush.msra.mxu0 0.0
  %1348 = vmatpush.msra.mxu0 0.0
  %1349 = vmatpush.msra.mxu0 0.0
  %1350 = vmatpush.msra.mxu0 0.0
  %1351 = vmatpush.msra.mxu0 0.0
  %1352 = vmatpush.msra.mxu0 0.0
  %1353 = vmatpush.msra.mxu0 0.0
  %1354 = vmatpush.msra.mxu0 0.0
  %1355 = vmatpush.msra.mxu0 0.0
  %1356 = vmatpush.msra.mxu0 0.0
  %1357 = vmatpush.msra.mxu0 %v1342
  %1358 = vmatpush.msra.mxu0 %v1341
  %1359 = vmatmul.f32.gmra.mxu0 %v795
  %v1360 = vpop.f32.mrf.mxu0
  %v1361 = vadd.f32 0.0, %v1360
  %1362 = vmatmul.f32.gmra.mxu0 %v798
  %v1363 = vpop.f32.mrf.mxu0
  %v1364 = vadd.f32 0.0, %v1363
  %1365 = vmatmul.f32.gmra.mxu0 %v801
  %v1366 = vpop.f32.mrf.mxu0
  %v1367 = vadd.f32 0.0, %v1366
  %1368 = vmatmul.f32.gmra.mxu0 %v804
  %v1369 = vpop.f32.mrf.mxu0
  %v1370 = vadd.f32 0.0, %v1369
  %1371 = vmatmul.f32.gmra.mxu0 %v807
  %v1372 = vpop.f32.mrf.mxu0
  %v1373 = vadd.f32 0.0, %v1372
  %1374 = vmatmul.f32.gmra.mxu0 %v810
  %v1375 = vpop.f32.mrf.mxu0
  %v1376 = vadd.f32 0.0, %v1375
  %1377 = vmatmul.f32.gmra.mxu0 %v813
  %v1378 = vpop.f32.mrf.mxu0
  %v1379 = vadd.f32 0.0, %v1378
  %1380 = vmatmul.f32.gmra.mxu0 %v816
  %v1381 = vpop.f32.mrf.mxu0
  %v1382 = vadd.f32 0.0, %v1381
  %1383 = vdwg.mxu0
  %v1384 = vadd.f32 %v443, %v1361
  %v1385 = vadd.f32 %v446, %v1364
  %v1386 = vadd.f32 %v449, %v1367
  %v1387 = vadd.f32 %v452, %v1370
  %v1388 = vadd.f32 %v455, %v1373
  %v1389 = vadd.f32 %v458, %v1376
  %v1390 = vadd.f32 %v461, %v1379
  %v1391 = vadd.f32 %v464, %v1382
  %v1392 = vxor.u32 %v1384, 2147483648
  %v1393 = vxor.u32 %v1385, 2147483648
  %v1394 = vxor.u32 %v1386, 2147483648
  %v1395 = vxor.u32 %v1387, 2147483648
  %v1396 = vxor.u32 %v1388, 2147483648
  %v1397 = vxor.u32 %v1389, 2147483648
  %v1398 = vmul.f32 %v1392, 1.442695
  %v1399 = vpow.pop %v1398
  %v1400 = vmul.f32 %v1393, 1.442695
  %v1401 = vpow.pop %v1400
  %v1402 = vmul.f32 %v1394, 1.442695
  %v1403 = vpow.pop %v1402
  %v1404 = vmul.f32 %v1395, 1.442695
  %v1405 = vpow.pop %v1404
  %v1406 = vmul.f32 %v1396, 1.442695
  %v1407 = vpow.pop %v1406
  %v1408 = vmul.f32 %v1397, 1.442695
  %v1409 = vpow.pop %v1408
  %v1410 = vadd.f32 %v1399, 1.0
  %v1411 = vadd.f32 %v1401, 1.0
  %v1412 = vadd.f32 %v1403, 1.0
  %v1413 = vadd.f32 %v1405, 1.0
  %v1414 = vadd.f32 %v1407, 1.0
  %v1415 = vadd.f32 %v1409, 1.0
  %v1416 = vrcp.pop %v1410
  %v1417 = vmul.f32 %v1410, %v1416
  %v1418 = vsub.f32 1.0, %v1417
  %v1419 = vmul.f32 %v1416, %v1418
  %v1420 = vadd.f32 %v1416, %v1419
  %vm1421 = vweird.f32 %v1410
  %vm1422 = vweird.f32 %v1416
  %vm1423 = vmor %vm1421, %vm1422
  %v1424 = vsel %vm1423, %v1416, %v1420
  %v1425 = vand.u32 2147483647, %v1410
  %vm1426 = vcmp.eq.f32.partialorder %v1425, 8.507059e+37
  %v1427 = vand.u32 %v1410, 2147483648
  %v1428 = vor.u32 1.1754944e-38, %v1427
  %v1429 = vsel %vm1426, %v1428, %v1424
  %v1430 = vmul.f32 1.0, %v1429
  %v1431 = vrcp.pop %v1411
  %v1432 = vmul.f32 %v1411, %v1431
  %v1433 = vsub.f32 1.0, %v1432
  %v1434 = vmul.f32 %v1431, %v1433
  %v1435 = vadd.f32 %v1431, %v1434
  %vm1436 = vweird.f32 %v1411
  %vm1437 = vweird.f32 %v1431
  %vm1438 = vmor %vm1436, %vm1437
  %v1439 = vsel %vm1438, %v1431, %v1435
  %v1440 = vand.u32 2147483647, %v1411
  %vm1441 = vcmp.eq.f32.partialorder %v1440, 8.507059e+37
  %v1442 = vand.u32 %v1411, 2147483648
  %v1443 = vor.u32 1.1754944e-38, %v1442
  %v1444 = vsel %vm1441, %v1443, %v1439
  %v1445 = vmul.f32 1.0, %v1444
  %v1446 = vrcp.pop %v1412
  %v1447 = vmul.f32 %v1412, %v1446
  %v1448 = vsub.f32 1.0, %v1447
  %v1449 = vmul.f32 %v1446, %v1448
  %v1450 = vadd.f32 %v1446, %v1449
  %vm1451 = vweird.f32 %v1412
  %vm1452 = vweird.f32 %v1446
  %vm1453 = vmor %vm1451, %vm1452
  %v1454 = vsel %vm1453, %v1446, %v1450
  %v1455 = vand.u32 2147483647, %v1412
  %vm1456 = vcmp.eq.f32.partialorder %v1455, 8.507059e+37
  %v1457 = vand.u32 %v1412, 2147483648
  %v1458 = vor.u32 1.1754944e-38, %v1457
  %v1459 = vsel %vm1456, %v1458, %v1454
  %v1460 = vmul.f32 1.0, %v1459
  %v1461 = vrcp.pop %v1413
  %v1462 = vmul.f32 %v1413, %v1461
  %v1463 = vsub.f32 1.0, %v1462
  %v1464 = vmul.f32 %v1461, %v1463
  %v1465 = vadd.f32 %v1461, %v1464
  %vm1466 = vweird.f32 %v1413
  %vm1467 = vweird.f32 %v1461
  %vm1468 = vmor %vm1466, %vm1467
  %v1469 = vsel %vm1468, %v1461, %v1465
  %v1470 = vand.u32 2147483647, %v1413
  %vm1471 = vcmp.eq.f32.partialorder %v1470, 8.507059e+37
  %v1472 = vand.u32 %v1413, 2147483648
  %v1473 = vor.u32 1.1754944e-38, %v1472
  %v1474 = vsel %vm1471, %v1473, %v1469
  %v1475 = vmul.f32 1.0, %v1474
  %v1476 = vrcp.pop %v1414
  %v1477 = vmul.f32 %v1414, %v1476
  %v1478 = vsub.f32 1.0, %v1477
  %v1479 = vmul.f32 %v1476, %v1478
  %v1480 = vadd.f32 %v1476, %v1479
  %vm1481 = vweird.f32 %v1414
  %vm1482 = vweird.f32 %v1476
  %vm1483 = vmor %vm1481, %vm1482
  %v1484 = vsel %vm1483, %v1476, %v1480
  %v1485 = vand.u32 2147483647, %v1414
  %vm1486 = vcmp.eq.f32.partialorder %v1485, 8.507059e+37
  %v1487 = vand.u32 %v1414, 2147483648
  %v1488 = vor.u32 1.1754944e-38, %v1487
  %v1489 = vsel %vm1486, %v1488, %v1484
  %v1490 = vmul.f32 1.0, %v1489
  %v1491 = vrcp.pop %v1415
  %v1492 = vmul.f32 %v1415, %v1491
  %v1493 = vsub.f32 1.0, %v1492
  %v1494 = vmul.f32 %v1491, %v1493
  %v1495 = vadd.f32 %v1491, %v1494
  %vm1496 = vweird.f32 %v1415
  %vm1497 = vweird.f32 %v1491
  %vm1498 = vmor %vm1496, %vm1497
  %v1499 = vsel %vm1498, %v1491, %v1495
  %v1500 = vand.u32 2147483647, %v1415
  %vm1501 = vcmp.eq.f32.partialorder %v1500, 8.507059e+37
  %v1502 = vand.u32 %v1415, 2147483648
  %v1503 = vor.u32 1.1754944e-38, %v1502
  %v1504 = vsel %vm1501, %v1503, %v1499
  %v1505 = vmul.f32 1.0, %v1504
  %v1506 = vtanh.pop %v1390
  %v1507 = vtanh.pop %v1391
  %v1508 = vmul.f32 %v1460, %v1337
  %v1509 = vmul.f32 %v1475, %v1338
  %v1510 = vmul.f32 %v1430, %v1506
  %v1511 = vmul.f32 %v1445, %v1507
  %v1512 = vadd.f32 %v1508, %v1510
  %v1513 = vadd.f32 %v1509, %v1511
  %v1514 = vtanh.pop %v1512
  %v1515 = vtanh.pop %v1513
  %v1516 = vmul.f32 %v1490, %v1514
  %v1517 = vmul.f32 %v1505, %v1515
  %1518 = vmatpush.msra.mxu0 0.0
  %1519 = vmatpush.msra.mxu0 0.0
  %1520 = vmatpush.msra.mxu0 0.0
  %1521 = vmatpush.msra.mxu0 0.0
  %1522 = vmatpush.msra.mxu0 0.0
  %1523 = vmatpush.msra.mxu0 0.0
  %1524 = vmatpush.msra.mxu0 0.0
  %1525 = vmatpush.msra.mxu0 0.0
  %1526 = vmatpush.msra.mxu0 0.0
  %1527 = vmatpush.msra.mxu0 0.0
  %1528 = vmatpush.msra.mxu0 0.0
  %1529 = vmatpush.msra.mxu0 0.0
  %1530 = vmatpush.msra.mxu0 0.0
  %1531 = vmatpush.msra.mxu0 0.0
  %1532 = vmatpush.msra.mxu0 %v1517
  %1533 = vmatpush.msra.mxu0 %v1516
  %1534 = vmatmul.f32.gmra.mxu0 %v795
  %v1535 = vpop.f32.mrf.mxu0
  %v1536 = vadd.f32 0.0, %v1535
  %1537 = vmatmul.f32.gmra.mxu0 %v798
  %v1538 = vpop.f32.mrf.mxu0
  %v1539 = vadd.f32 0.0, %v1538
  %1540 = vmatmul.f32.gmra.mxu0 %v801
  %v1541 = vpop.f32.mrf.mxu0
  %v1542 = vadd.f32 0.0, %v1541
  %1543 = vmatmul.f32.gmra.mxu0 %v804
  %v1544 = vpop.f32.mrf.mxu0
  %v1545 = vadd.f32 0.0, %v1544
  %1546 = vmatmul.f32.gmra.mxu0 %v807
  %v1547 = vpop.f32.mrf.mxu0
  %v1548 = vadd.f32 0.0, %v1547
  %1549 = vmatmul.f32.gmra.mxu0 %v810
  %v1550 = vpop.f32.mrf.mxu0
  %v1551 = vadd.f32 0.0, %v1550
  %1552 = vmatmul.f32.gmra.mxu0 %v813
  %v1553 = vpop.f32.mrf.mxu0
  %v1554 = vadd.f32 0.0, %v1553
  %1555 = vmatmul.f32.gmra.mxu0 %v816
  %v1556 = vpop.f32.mrf.mxu0
  %v1557 = vadd.f32 0.0, %v1556
  %1558 = vdwg.mxu0
  %v1559 = vadd.f32 %v500, %v1536
  %v1560 = vadd.f32 %v503, %v1539
  %v1561 = vadd.f32 %v506, %v1542
  %v1562 = vadd.f32 %v509, %v1545
  %v1563 = vadd.f32 %v512, %v1548
  %v1564 = vadd.f32 %v515, %v1551
  %v1565 = vadd.f32 %v518, %v1554
  %v1566 = vadd.f32 %v521, %v1557
  %v1567 = vxor.u32 %v1559, 2147483648
  %v1568 = vxor.u32 %v1560, 2147483648
  %v1569 = vxor.u32 %v1561, 2147483648
  %v1570 = vxor.u32 %v1562, 2147483648
  %v1571 = vxor.u32 %v1563, 2147483648
  %v1572 = vxor.u32 %v1564, 2147483648
  %v1573 = vmul.f32 %v1567, 1.442695
  %v1574 = vpow.pop %v1573
  %v1575 = vmul.f32 %v1568, 1.442695
  %v1576 = vpow.pop %v1575
  %v1577 = vmul.f32 %v1569, 1.442695
  %v1578 = vpow.pop %v1577
  %v1579 = vmul.f32 %v1570, 1.442695
  %v1580 = vpow.pop %v1579
  %v1581 = vmul.f32 %v1571, 1.442695
  %v1582 = vpow.pop %v1581
  %v1583 = vmul.f32 %v1572, 1.442695
  %v1584 = vpow.pop %v1583
  %v1585 = vadd.f32 %v1574, 1.0
  %v1586 = vadd.f32 %v1576, 1.0
  %v1587 = vadd.f32 %v1578, 1.0
  %v1588 = vadd.f32 %v1580, 1.0
  %v1589 = vadd.f32 %v1582, 1.0
  %v1590 = vadd.f32 %v1584, 1.0
  %v1591 = vrcp.pop %v1585
  %v1592 = vmul.f32 %v1585, %v1591
  %v1593 = vsub.f32 1.0, %v1592
  %v1594 = vmul.f32 %v1591, %v1593
  %v1595 = vadd.f32 %v1591, %v1594
  %vm1596 = vweird.f32 %v1585
  %vm1597 = vweird.f32 %v1591
  %vm1598 = vmor %vm1596, %vm1597
  %v1599 = vsel %vm1598, %v1591, %v1595
  %v1600 = vand.u32 2147483647, %v1585
  %vm1601 = vcmp.eq.f32.partialorder %v1600, 8.507059e+37
  %v1602 = vand.u32 %v1585, 2147483648
  %v1603 = vor.u32 1.1754944e-38, %v1602
  %v1604 = vsel %vm1601, %v1603, %v1599
  %v1605 = vmul.f32 1.0, %v1604
  %v1606 = vrcp.pop %v1586
  %v1607 = vmul.f32 %v1586, %v1606
  %v1608 = vsub.f32 1.0, %v1607
  %v1609 = vmul.f32 %v1606, %v1608
  %v1610 = vadd.f32 %v1606, %v1609
  %vm1611 = vweird.f32 %v1586
  %vm1612 = vweird.f32 %v1606
  %vm1613 = vmor %vm1611, %vm1612
  %v1614 = vsel %vm1613, %v1606, %v1610
  %v1615 = vand.u32 2147483647, %v1586
  %vm1616 = vcmp.eq.f32.partialorder %v1615, 8.507059e+37
  %v1617 = vand.u32 %v1586, 2147483648
  %v1618 = vor.u32 1.1754944e-38, %v1617
  %v1619 = vsel %vm1616, %v1618, %v1614
  %v1620 = vmul.f32 1.0, %v1619
  %v1621 = vrcp.pop %v1587
  %v1622 = vmul.f32 %v1587, %v1621
  %v1623 = vsub.f32 1.0, %v1622
  %v1624 = vmul.f32 %v1621, %v1623
  %v1625 = vadd.f32 %v1621, %v1624
  %vm1626 = vweird.f32 %v1587
  %vm1627 = vweird.f32 %v1621
  %vm1628 = vmor %vm1626, %vm1627
  %v1629 = vsel %vm1628, %v1621, %v1625
  %v1630 = vand.u32 2147483647, %v1587
  %vm1631 = vcmp.eq.f32.partialorder %v1630, 8.507059e+37
  %v1632 = vand.u32 %v1587, 2147483648
  %v1633 = vor.u32 1.1754944e-38, %v1632
  %v1634 = vsel %vm1631, %v1633, %v1629
  %v1635 = vmul.f32 1.0, %v1634
  %v1636 = vrcp.pop %v1588
  %v1637 = vmul.f32 %v1588, %v1636
  %v1638 = vsub.f32 1.0, %v1637
  %v1639 = vmul.f32 %v1636, %v1638
  %v1640 = vadd.f32 %v1636, %v1639
  %vm1641 = vweird.f32 %v1588
  %vm1642 = vweird.f32 %v1636
  %vm1643 = vmor %vm1641, %vm1642
  %v1644 = vsel %vm1643, %v1636, %v1640
  %v1645 = vand.u32 2147483647, %v1588
  %vm1646 = vcmp.eq.f32.partialorder %v1645, 8.507059e+37
  %v1647 = vand.u32 %v1588, 2147483648
  %v1648 = vor.u32 1.1754944e-38, %v1647
  %v1649 = vsel %vm1646, %v1648, %v1644
  %v1650 = vmul.f32 1.0, %v1649
  %v1651 = vrcp.pop %v1589
  %v1652 = vmul.f32 %v1589, %v1651
  %v1653 = vsub.f32 1.0, %v1652
  %v1654 = vmul.f32 %v1651, %v1653
  %v1655 = vadd.f32 %v1651, %v1654
  %vm1656 = vweird.f32 %v1589
  %vm1657 = vweird.f32 %v1651
  %vm1658 = vmor %vm1656, %vm1657
  %v1659 = vsel %vm1658, %v1651, %v1655
  %v1660 = vand.u32 2147483647, %v1589
  %vm1661 = vcmp.eq.f32.partialorder %v1660, 8.507059e+37
  %v1662 = vand.u32 %v1589, 2147483648
  %v1663 = vor.u32 1.1754944e-38, %v1662
  %v1664 = vsel %vm1661, %v1663, %v1659
  %v1665 = vmul.f32 1.0, %v1664
  %v1666 = vrcp.pop %v1590
  %v1667 = vmul.f32 %v1590, %v1666
  %v1668 = vsub.f32 1.0, %v1667
  %v1669 = vmul.f32 %v1666, %v1668
  %v1670 = vadd.f32 %v1666, %v1669
  %vm1671 = vweird.f32 %v1590
  %vm1672 = vweird.f32 %v1666
  %vm1673 = vmor %vm1671, %vm1672
  %v1674 = vsel %vm1673, %v1666, %v1670
  %v1675 = vand.u32 2147483647, %v1590
  %vm1676 = vcmp.eq.f32.partialorder %v1675, 8.507059e+37
  %v1677 = vand.u32 %v1590, 2147483648
  %v1678 = vor.u32 1.1754944e-38, %v1677
  %v1679 = vsel %vm1676, %v1678, %v1674
  %v1680 = vmul.f32 1.0, %v1679
  %v1681 = vtanh.pop %v1565
  %v1682 = vtanh.pop %v1566
  %v1683 = vmul.f32 %v1635, %v1512
  %v1684 = vmul.f32 %v1650, %v1513
  %v1685 = vmul.f32 %v1605, %v1681
  %v1686 = vmul.f32 %v1620, %v1682
  %v1687 = vadd.f32 %v1683, %v1685
  %v1688 = vadd.f32 %v1684, %v1686
  %v1689 = vtanh.pop %v1687
  %v1690 = vtanh.pop %v1688
  %v1691 = vmul.f32 %v1665, %v1689
  %v1692 = vmul.f32 %v1680, %v1690
  %1693 = vmatpush.msra.mxu0 0.0
  %1694 = vmatpush.msra.mxu0 0.0
  %1695 = vmatpush.msra.mxu0 0.0
  %1696 = vmatpush.msra.mxu0 0.0
  %1697 = vmatpush.msra.mxu0 0.0
  %1698 = vmatpush.msra.mxu0 0.0
  %1699 = vmatpush.msra.mxu0 0.0
  %1700 = vmatpush.msra.mxu0 0.0
  %1701 = vmatpush.msra.mxu0 0.0
  %1702 = vmatpush.msra.mxu0 0.0
  %1703 = vmatpush.msra.mxu0 0.0
  %1704 = vmatpush.msra.mxu0 0.0
  %1705 = vmatpush.msra.mxu0 0.0
  %1706 = vmatpush.msra.mxu0 0.0
  %1707 = vmatpush.msra.mxu0 %v1692
  %1708 = vmatpush.msra.mxu0 %v1691
  %1709 = vmatmul.f32.gmra.mxu0 %v795
  %v1710 = vpop.f32.mrf.mxu0
  %v1711 = vadd.f32 0.0, %v1710
  %1712 = vmatmul.f32.gmra.mxu0 %v798
  %v1713 = vpop.f32.mrf.mxu0
  %v1714 = vadd.f32 0.0, %v1713
  %1715 = vmatmul.f32.gmra.mxu0 %v801
  %v1716 = vpop.f32.mrf.mxu0
  %v1717 = vadd.f32 0.0, %v1716
  %1718 = vmatmul.f32.gmra.mxu0 %v804
  %v1719 = vpop.f32.mrf.mxu0
  %v1720 = vadd.f32 0.0, %v1719
  %1721 = vmatmul.f32.gmra.mxu0 %v807
  %v1722 = vpop.f32.mrf.mxu0
  %v1723 = vadd.f32 0.0, %v1722
  %1724 = vmatmul.f32.gmra.mxu0 %v810
  %v1725 = vpop.f32.mrf.mxu0
  %v1726 = vadd.f32 0.0, %v1725
  %1727 = vmatmul.f32.gmra.mxu0 %v813
  %v1728 = vpop.f32.mrf.mxu0
  %v1729 = vadd.f32 0.0, %v1728
  %1730 = vmatmul.f32.gmra.mxu0 %v816
  %v1731 = vpop.f32.mrf.mxu0
  %v1732 = vadd.f32 0.0, %v1731
  %1733 = vdwg.mxu0
  %v1734 = vadd.f32 %v557, %v1711
  %v1735 = vadd.f32 %v560, %v1714
  %v1736 = vadd.f32 %v563, %v1717
  %v1737 = vadd.f32 %v566, %v1720
  %v1738 = vadd.f32 %v569, %v1723
  %v1739 = vadd.f32 %v572, %v1726
  %v1740 = vadd.f32 %v575, %v1729
  %v1741 = vadd.f32 %v578, %v1732
  %v1742 = vxor.u32 %v1734, 2147483648
  %v1743 = vxor.u32 %v1735, 2147483648
  %v1744 = vxor.u32 %v1736, 2147483648
  %v1745 = vxor.u32 %v1737, 2147483648
  %v1746 = vxor.u32 %v1738, 2147483648
  %v1747 = vxor.u32 %v1739, 2147483648
  %v1748 = vmul.f32 %v1742, 1.442695
  %v1749 = vpow.pop %v1748
  %v1750 = vmul.f32 %v1743, 1.442695
  %v1751 = vpow.pop %v1750
  %v1752 = vmul.f32 %v1744, 1.442695
  %v1753 = vpow.pop %v1752
  %v1754 = vmul.f32 %v1745, 1.442695
  %v1755 = vpow.pop %v1754
  %v1756 = vmul.f32 %v1746, 1.442695
  %v1757 = vpow.pop %v1756
  %v1758 = vmul.f32 %v1747, 1.442695
  %v1759 = vpow.pop %v1758
  %v1760 = vadd.f32 %v1749, 1.0
  %v1761 = vadd.f32 %v1751, 1.0
  %v1762 = vadd.f32 %v1753, 1.0
  %v1763 = vadd.f32 %v1755, 1.0
  %v1764 = vadd.f32 %v1757, 1.0
  %v1765 = vadd.f32 %v1759, 1.0
  %v1766 = vrcp.pop %v1760
  %v1767 = vmul.f32 %v1760, %v1766
  %v1768 = vsub.f32 1.0, %v1767
  %v1769 = vmul.f32 %v1766, %v1768
  %v1770 = vadd.f32 %v1766, %v1769
  %vm1771 = vweird.f32 %v1760
  %vm1772 = vweird.f32 %v1766
  %vm1773 = vmor %vm1771, %vm1772
  %v1774 = vsel %vm1773, %v1766, %v1770
  %v1775 = vand.u32 2147483647, %v1760
  %vm1776 = vcmp.eq.f32.partialorder %v1775, 8.507059e+37
  %v1777 = vand.u32 %v1760, 2147483648
  %v1778 = vor.u32 1.1754944e-38, %v1777
  %v1779 = vsel %vm1776, %v1778, %v1774
  %v1780 = vmul.f32 1.0, %v1779
  %v1781 = vrcp.pop %v1761
  %v1782 = vmul.f32 %v1761, %v1781
  %v1783 = vsub.f32 1.0, %v1782
  %v1784 = vmul.f32 %v1781, %v1783
  %v1785 = vadd.f32 %v1781, %v1784
  %vm1786 = vweird.f32 %v1761
  %vm1787 = vweird.f32 %v1781
  %vm1788 = vmor %vm1786, %vm1787
  %v1789 = vsel %vm1788, %v1781, %v1785
  %v1790 = vand.u32 2147483647, %v1761
  %vm1791 = vcmp.eq.f32.partialorder %v1790, 8.507059e+37
  %v1792 = vand.u32 %v1761, 2147483648
  %v1793 = vor.u32 1.1754944e-38, %v1792
  %v1794 = vsel %vm1791, %v1793, %v1789
  %v1795 = vmul.f32 1.0, %v1794
  %v1796 = vrcp.pop %v1762
  %v1797 = vmul.f32 %v1762, %v1796
  %v1798 = vsub.f32 1.0, %v1797
  %v1799 = vmul.f32 %v1796, %v1798
  %v1800 = vadd.f32 %v1796, %v1799
  %vm1801 = vweird.f32 %v1762
  %vm1802 = vweird.f32 %v1796
  %vm1803 = vmor %vm1801, %vm1802
  %v1804 = vsel %vm1803, %v1796, %v1800
  %v1805 = vand.u32 2147483647, %v1762
  %vm1806 = vcmp.eq.f32.partialorder %v1805, 8.507059e+37
  %v1807 = vand.u32 %v1762, 2147483648
  %v1808 = vor.u32 1.1754944e-38, %v1807
  %v1809 = vsel %vm1806, %v1808, %v1804
  %v1810 = vmul.f32 1.0, %v1809
  %v1811 = vrcp.pop %v1763
  %v1812 = vmul.f32 %v1763, %v1811
  %v1813 = vsub.f32 1.0, %v1812
  %v1814 = vmul.f32 %v1811, %v1813
  %v1815 = vadd.f32 %v1811, %v1814
  %vm1816 = vweird.f32 %v1763
  %vm1817 = vweird.f32 %v1811
  %vm1818 = vmor %vm1816, %vm1817
  %v1819 = vsel %vm1818, %v1811, %v1815
  %v1820 = vand.u32 2147483647, %v1763
  %vm1821 = vcmp.eq.f32.partialorder %v1820, 8.507059e+37
  %v1822 = vand.u32 %v1763, 2147483648
  %v1823 = vor.u32 1.1754944e-38, %v1822
  %v1824 = vsel %vm1821, %v1823, %v1819
  %v1825 = vmul.f32 1.0, %v1824
  %v1826 = vrcp.pop %v1764
  %v1827 = vmul.f32 %v1764, %v1826
  %v1828 = vsub.f32 1.0, %v1827
  %v1829 = vmul.f32 %v1826, %v1828
  %v1830 = vadd.f32 %v1826, %v1829
  %vm1831 = vweird.f32 %v1764
  %vm1832 = vweird.f32 %v1826
  %vm1833 = vmor %vm1831, %vm1832
  %v1834 = vsel %vm1833, %v1826, %v1830
  %v1835 = vand.u32 2147483647, %v1764
  %vm1836 = vcmp.eq.f32.partialorder %v1835, 8.507059e+37
  %v1837 = vand.u32 %v1764, 2147483648
  %v1838 = vor.u32 1.1754944e-38, %v1837
  %v1839 = vsel %vm1836, %v1838, %v1834
  %v1840 = vmul.f32 1.0, %v1839
  %v1841 = vrcp.pop %v1765
  %v1842 = vmul.f32 %v1765, %v1841
  %v1843 = vsub.f32 1.0, %v1842
  %v1844 = vmul.f32 %v1841, %v1843
  %v1845 = vadd.f32 %v1841, %v1844
  %vm1846 = vweird.f32 %v1765
  %vm1847 = vweird.f32 %v1841
  %vm1848 = vmor %vm1846, %vm1847
  %v1849 = vsel %vm1848, %v1841, %v1845
  %v1850 = vand.u32 2147483647, %v1765
  %vm1851 = vcmp.eq.f32.partialorder %v1850, 8.507059e+37
  %v1852 = vand.u32 %v1765, 2147483648
  %v1853 = vor.u32 1.1754944e-38, %v1852
  %v1854 = vsel %vm1851, %v1853, %v1849
  %v1855 = vmul.f32 1.0, %v1854
  %v1856 = vtanh.pop %v1740
  %v1857 = vtanh.pop %v1741
  %v1858 = vmul.f32 %v1810, %v1687
  %v1859 = vmul.f32 %v1825, %v1688
  %v1860 = vmul.f32 %v1780, %v1856
  %v1861 = vmul.f32 %v1795, %v1857
  %v1862 = vadd.f32 %v1858, %v1860
  %v1863 = vadd.f32 %v1859, %v1861
  %v1864 = vtanh.pop %v1862
  %v1865 = vtanh.pop %v1863
  %v1866 = vmul.f32 %v1840, %v1864
  %v1867 = vmul.f32 %v1855, %v1865
  %1868 = vmatpush.msra.mxu0 0.0
  %1869 = vmatpush.msra.mxu0 0.0
  %1870 = vmatpush.msra.mxu0 0.0
  %1871 = vmatpush.msra.mxu0 0.0
  %1872 = vmatpush.msra.mxu0 0.0
  %1873 = vmatpush.msra.mxu0 0.0
  %1874 = vmatpush.msra.mxu0 0.0
  %1875 = vmatpush.msra.mxu0 0.0
  %1876 = vmatpush.msra.mxu0 0.0
  %1877 = vmatpush.msra.mxu0 0.0
  %1878 = vmatpush.msra.mxu0 0.0
  %1879 = vmatpush.msra.mxu0 0.0
  %1880 = vmatpush.msra.mxu0 0.0
  %1881 = vmatpush.msra.mxu0 0.0
  %1882 = vmatpush.msra.mxu0 %v1867
  %1883 = vmatpush.msra.mxu0 %v1866
  %1884 = vmatmul.f32.gmra.mxu0 %v795
  %v1885 = vpop.f32.mrf.mxu0
  %v1886 = vadd.f32 0.0, %v1885
  %1887 = vmatmul.f32.gmra.mxu0 %v798
  %v1888 = vpop.f32.mrf.mxu0
  %v1889 = vadd.f32 0.0, %v1888
  %1890 = vmatmul.f32.gmra.mxu0 %v801
  %v1891 = vpop.f32.mrf.mxu0
  %v1892 = vadd.f32 0.0, %v1891
  %1893 = vmatmul.f32.gmra.mxu0 %v804
  %v1894 = vpop.f32.mrf.mxu0
  %v1895 = vadd.f32 0.0, %v1894
  %1896 = vmatmul.f32.gmra.mxu0 %v807
  %v1897 = vpop.f32.mrf.mxu0
  %v1898 = vadd.f32 0.0, %v1897
  %1899 = vmatmul.f32.gmra.mxu0 %v810
  %v1900 = vpop.f32.mrf.mxu0
  %v1901 = vadd.f32 0.0, %v1900
  %1902 = vmatmul.f32.gmra.mxu0 %v813
  %v1903 = vpop.f32.mrf.mxu0
  %v1904 = vadd.f32 0.0, %v1903
  %1905 = vmatmul.f32.gmra.mxu0 %v816
  %v1906 = vpop.f32.mrf.mxu0
  %v1907 = vadd.f32 0.0, %v1906
  %1908 = vdwg.mxu0
  %v1909 = vadd.f32 %v614, %v1886
  %v1910 = vadd.f32 %v617, %v1889
  %v1911 = vadd.f32 %v620, %v1892
  %v1912 = vadd.f32 %v623, %v1895
  %v1913 = vadd.f32 %v626, %v1898
  %v1914 = vadd.f32 %v629, %v1901
  %v1915 = vadd.f32 %v632, %v1904
  %v1916 = vadd.f32 %v635, %v1907
  %v1917 = vxor.u32 %v1909, 2147483648
  %v1918 = vxor.u32 %v1910, 2147483648
  %v1919 = vxor.u32 %v1911, 2147483648
  %v1920 = vxor.u32 %v1912, 2147483648
  %v1921 = vxor.u32 %v1913, 2147483648
  %v1922 = vxor.u32 %v1914, 2147483648
  %v1923 = vmul.f32 %v1917, 1.442695
  %v1924 = vpow.pop %v1923
  %v1925 = vmul.f32 %v1918, 1.442695
  %v1926 = vpow.pop %v1925
  %v1927 = vmul.f32 %v1919, 1.442695
  %v1928 = vpow.pop %v1927
  %v1929 = vmul.f32 %v1920, 1.442695
  %v1930 = vpow.pop %v1929
  %v1931 = vmul.f32 %v1921, 1.442695
  %v1932 = vpow.pop %v1931
  %v1933 = vmul.f32 %v1922, 1.442695
  %v1934 = vpow.pop %v1933
  %v1935 = vadd.f32 %v1924, 1.0
  %v1936 = vadd.f32 %v1926, 1.0
  %v1937 = vadd.f32 %v1928, 1.0
  %v1938 = vadd.f32 %v1930, 1.0
  %v1939 = vadd.f32 %v1932, 1.0
  %v1940 = vadd.f32 %v1934, 1.0
  %v1941 = vrcp.pop %v1935
  %v1942 = vmul.f32 %v1935, %v1941
  %v1943 = vsub.f32 1.0, %v1942
  %v1944 = vmul.f32 %v1941, %v1943
  %v1945 = vadd.f32 %v1941, %v1944
  %vm1946 = vweird.f32 %v1935
  %vm1947 = vweird.f32 %v1941
  %vm1948 = vmor %vm1946, %vm1947
  %v1949 = vsel %vm1948, %v1941, %v1945
  %v1950 = vand.u32 2147483647, %v1935
  %vm1951 = vcmp.eq.f32.partialorder %v1950, 8.507059e+37
  %v1952 = vand.u32 %v1935, 2147483648
  %v1953 = vor.u32 1.1754944e-38, %v1952
  %v1954 = vsel %vm1951, %v1953, %v1949
  %v1955 = vmul.f32 1.0, %v1954
  %v1956 = vrcp.pop %v1936
  %v1957 = vmul.f32 %v1936, %v1956
  %v1958 = vsub.f32 1.0, %v1957
  %v1959 = vmul.f32 %v1956, %v1958
  %v1960 = vadd.f32 %v1956, %v1959
  %vm1961 = vweird.f32 %v1936
  %vm1962 = vweird.f32 %v1956
  %vm1963 = vmor %vm1961, %vm1962
  %v1964 = vsel %vm1963, %v1956, %v1960
  %v1965 = vand.u32 2147483647, %v1936
  %vm1966 = vcmp.eq.f32.partialorder %v1965, 8.507059e+37
  %v1967 = vand.u32 %v1936, 2147483648
  %v1968 = vor.u32 1.1754944e-38, %v1967
  %v1969 = vsel %vm1966, %v1968, %v1964
  %v1970 = vmul.f32 1.0, %v1969
  %v1971 = vrcp.pop %v1937
  %v1972 = vmul.f32 %v1937, %v1971
  %v1973 = vsub.f32 1.0, %v1972
  %v1974 = vmul.f32 %v1971, %v1973
  %v1975 = vadd.f32 %v1971, %v1974
  %vm1976 = vweird.f32 %v1937
  %vm1977 = vweird.f32 %v1971
  %vm1978 = vmor %vm1976, %vm1977
  %v1979 = vsel %vm1978, %v1971, %v1975
  %v1980 = vand.u32 2147483647, %v1937
  %vm1981 = vcmp.eq.f32.partialorder %v1980, 8.507059e+37
  %v1982 = vand.u32 %v1937, 2147483648
  %v1983 = vor.u32 1.1754944e-38, %v1982
  %v1984 = vsel %vm1981, %v1983, %v1979
  %v1985 = vmul.f32 1.0, %v1984
  %v1986 = vrcp.pop %v1938
  %v1987 = vmul.f32 %v1938, %v1986
  %v1988 = vsub.f32 1.0, %v1987
  %v1989 = vmul.f32 %v1986, %v1988
  %v1990 = vadd.f32 %v1986, %v1989
  %vm1991 = vweird.f32 %v1938
  %vm1992 = vweird.f32 %v1986
  %vm1993 = vmor %vm1991, %vm1992
  %v1994 = vsel %vm1993, %v1986, %v1990
  %v1995 = vand.u32 2147483647, %v1938
  %vm1996 = vcmp.eq.f32.partialorder %v1995, 8.507059e+37
  %v1997 = vand.u32 %v1938, 2147483648
  %v1998 = vor.u32 1.1754944e-38, %v1997
  %v1999 = vsel %vm1996, %v1998, %v1994
  %v2000 = vmul.f32 1.0, %v1999
  %v2001 = vrcp.pop %v1939
  %v2002 = vmul.f32 %v1939, %v2001
  %v2003 = vsub.f32 1.0, %v2002
  %v2004 = vmul.f32 %v2001, %v2003
  %v2005 = vadd.f32 %v2001, %v2004
  %vm2006 = vweird.f32 %v1939
  %vm2007 = vweird.f32 %v2001
  %vm2008 = vmor %vm2006, %vm2007
  %v2009 = vsel %vm2008, %v2001, %v2005
  %v2010 = vand.u32 2147483647, %v1939
  %vm2011 = vcmp.eq.f32.partialorder %v2010, 8.507059e+37
  %v2012 = vand.u32 %v1939, 2147483648
  %v2013 = vor.u32 1.1754944e-38, %v2012
  %v2014 = vsel %vm2011, %v2013, %v2009
  %v2015 = vmul.f32 1.0, %v2014
  %v2016 = vrcp.pop %v1940
  %v2017 = vmul.f32 %v1940, %v2016
  %v2018 = vsub.f32 1.0, %v2017
  %v2019 = vmul.f32 %v2016, %v2018
  %v2020 = vadd.f32 %v2016, %v2019
  %vm2021 = vweird.f32 %v1940
  %vm2022 = vweird.f32 %v2016
  %vm2023 = vmor %vm2021, %vm2022
  %v2024 = vsel %vm2023, %v2016, %v2020
  %v2025 = vand.u32 2147483647, %v1940
  %vm2026 = vcmp.eq.f32.partialorder %v2025, 8.507059e+37
  %v2027 = vand.u32 %v1940, 2147483648
  %v2028 = vor.u32 1.1754944e-38, %v2027
  %v2029 = vsel %vm2026, %v2028, %v2024
  %v2030 = vmul.f32 1.0, %v2029
  %v2031 = vtanh.pop %v1915
  %v2032 = vtanh.pop %v1916
  %v2033 = vmul.f32 %v1985, %v1862
  %v2034 = vmul.f32 %v2000, %v1863
  %v2035 = vmul.f32 %v1955, %v2031
  %v2036 = vmul.f32 %v1970, %v2032
  %v2037 = vadd.f32 %v2033, %v2035
  %v2038 = vadd.f32 %v2034, %v2036
  %v2039 = vtanh.pop %v2037
  %v2040 = vtanh.pop %v2038
  %v2041 = vmul.f32 %v2015, %v2039
  %v2042 = vmul.f32 %v2030, %v2040
  %v2043 = vxor.u32 %v638, 2147483648
  %v2044 = vxor.u32 %v641, 2147483648
  %v2045 = vxor.u32 %v648, 2147483648
  %v2046 = vxor.u32 %v651, 2147483648
  %v2047 = vmul.f32 %v2043, 1.442695
  %v2048 = vpow.pop %v2047
  %v2049 = vmul.f32 %v2044, 1.442695
  %v2050 = vpow.pop %v2049
  %v2051 = vmul.f32 %v2045, 1.442695
  %v2052 = vpow.pop %v2051
  %v2053 = vmul.f32 %v2046, 1.442695
  %v2054 = vpow.pop %v2053
  %v2055 = vadd.f32 %v2048, 1.0
  %v2056 = vadd.f32 %v2050, 1.0
  %v2057 = vadd.f32 %v2052, 1.0
  %v2058 = vadd.f32 %v2054, 1.0
  %v2059 = vrcp.pop %v2055
  %v2060 = vmul.f32 %v2055, %v2059
  %v2061 = vsub.f32 1.0, %v2060
  %v2062 = vmul.f32 %v2059, %v2061
  %v2063 = vadd.f32 %v2059, %v2062
  %vm2064 = vweird.f32 %v2055
  %vm2065 = vweird.f32 %v2059
  %vm2066 = vmor %vm2064, %vm2065
  %v2067 = vsel %vm2066, %v2059, %v2063
  %v2068 = vand.u32 2147483647, %v2055
  %vm2069 = vcmp.eq.f32.partialorder %v2068, 8.507059e+37
  %v2070 = vand.u32 %v2055, 2147483648
  %v2071 = vor.u32 1.1754944e-38, %v2070
  %v2072 = vsel %vm2069, %v2071, %v2067
  %v2073 = vmul.f32 1.0, %v2072
  %v2074 = vrcp.pop %v2056
  %v2075 = vmul.f32 %v2056, %v2074
  %v2076 = vsub.f32 1.0, %v2075
  %v2077 = vmul.f32 %v2074, %v2076
  %v2078 = vadd.f32 %v2074, %v2077
  %vm2079 = vweird.f32 %v2056
  %vm2080 = vweird.f32 %v2074
  %vm2081 = vmor %vm2079, %vm2080
  %v2082 = vsel %vm2081, %v2074, %v2078
  %v2083 = vand.u32 2147483647, %v2056
  %vm2084 = vcmp.eq.f32.partialorder %v2083, 8.507059e+37
  %v2085 = vand.u32 %v2056, 2147483648
  %v2086 = vor.u32 1.1754944e-38, %v2085
  %v2087 = vsel %vm2084, %v2086, %v2082
  %v2088 = vmul.f32 1.0, %v2087
  %v2089 = vrcp.pop %v2057
  %v2090 = vmul.f32 %v2057, %v2089
  %v2091 = vsub.f32 1.0, %v2090
  %v2092 = vmul.f32 %v2089, %v2091
  %v2093 = vadd.f32 %v2089, %v2092
  %vm2094 = vweird.f32 %v2057
  %vm2095 = vweird.f32 %v2089
  %vm2096 = vmor %vm2094, %vm2095
  %v2097 = vsel %vm2096, %v2089, %v2093
  %v2098 = vand.u32 2147483647, %v2057
  %vm2099 = vcmp.eq.f32.partialorder %v2098, 8.507059e+37
  %v2100 = vand.u32 %v2057, 2147483648
  %v2101 = vor.u32 1.1754944e-38, %v2100
  %v2102 = vsel %vm2099, %v2101, %v2097
  %v2103 = vmul.f32 1.0, %v2102
  %v2104 = vrcp.pop %v2058
  %v2105 = vmul.f32 %v2058, %v2104
  %v2106 = vsub.f32 1.0, %v2105
  %v2107 = vmul.f32 %v2104, %v2106
  %v2108 = vadd.f32 %v2104, %v2107
  %vm2109 = vweird.f32 %v2058
  %vm2110 = vweird.f32 %v2104
  %vm2111 = vmor %vm2109, %vm2110
  %v2112 = vsel %vm2111, %v2104, %v2108
  %v2113 = vand.u32 2147483647, %v2058
  %vm2114 = vcmp.eq.f32.partialorder %v2113, 8.507059e+37
  %v2115 = vand.u32 %v2058, 2147483648
  %v2116 = vor.u32 1.1754944e-38, %v2115
  %v2117 = vsel %vm2114, %v2116, %v2112
  %v2118 = vmul.f32 1.0, %v2117
  %v2119 = vtanh.pop %v654
  %v2120 = vtanh.pop %v657
  %v2121 = vmul.f32 %v2073, %v2119
  %v2122 = vmul.f32 %v2088, %v2120
  %v2123 = vtanh.pop %v2121
  %v2124 = vtanh.pop %v2122
  %v2125 = vmul.f32 %v2103, %v2123
  %v2126 = vmul.f32 %v2118, %v2124
  %v2127 = vld [vmem:[%s3] sm:$0xff]
  %v2128 = vld [vmem:[%s3 + $0x8] sm:$0xff]
  %v2129 = vld [vmem:[%s3 + $0x10] sm:$0xff]
  %v2130 = vld [vmem:[%s3 + $0x18] sm:$0xff]
  %v2131 = vld [vmem:[%s4] sm:$0xff]
  %v2132 = vld [vmem:[%s4 + $0x8] sm:$0xff]
  %v2133 = vld [vmem:[%s4 + $0x10] sm:$0xff]
  %v2134 = vld [vmem:[%s4 + $0x18] sm:$0xff]
  %v2136 = vsel %vm793, %v2131, 0
  %v2139 = vsel %vm793, %v2132, 0
  %v2142 = vsel %vm793, %v2133, 0
  %v2145 = vsel %vm793, %v2134, 0
  %2147 = vmatpush.msra.mxu0 0.0
  %2148 = vmatpush.msra.mxu0 0.0
  %2149 = vmatpush.msra.mxu0 0.0
  %2150 = vmatpush.msra.mxu0 0.0
  %2151 = vmatpush.msra.mxu0 0.0
  %2152 = vmatpush.msra.mxu0 0.0
  %2153 = vmatpush.msra.mxu0 0.0
  %2154 = vmatpush.msra.mxu0 0.0
  %2155 = vmatpush.msra.mxu0 0.0
  %2156 = vmatpush.msra.mxu0 0.0
  %2157 = vmatpush.msra.mxu0 0.0
  %2158 = vmatpush.msra.mxu0 0.0
  %2159 = vmatpush.msra.mxu0 0.0
  %2160 = vmatpush.msra.mxu0 0.0
  %2161 = vmatpush.msra.mxu0 %v2126
  %2162 = vmatpush.msra.mxu0 %v2125
  %2163 = vmatmul.f32.gmra.mxu0 %v2136
  %v2164 = vpop.f32.mrf.mxu0
  %v2165 = vadd.f32 0.0, %v2164
  %2166 = vmatmul.f32.gmra.mxu0 %v2139
  %v2167 = vpop.f32.mrf.mxu0
  %v2168 = vadd.f32 0.0, %v2167
  %2169 = vmatmul.f32.gmra.mxu0 %v2142
  %v2170 = vpop.f32.mrf.mxu0
  %v2171 = vadd.f32 0.0, %v2170
  %2172 = vmatmul.f32.gmra.mxu0 %v2145
  %v2173 = vpop.f32.mrf.mxu0
  %v2174 = vadd.f32 0.0, %v2173
  %2175 = vdwg.mxu0
  %v2177 = vsel %vm793, %v2127, 0
  %v2180 = vsel %vm793, %v2128, 0
  %v2183 = vsel %vm793, %v2129, 0
  %v2186 = vsel %vm793, %v2130, 0
  %2188 = vmatpush.msra.mxu0 0.0
  %2189 = vmatpush.msra.mxu0 0.0
  %2190 = vmatpush.msra.mxu0 0.0
  %2191 = vmatpush.msra.mxu0 0.0
  %2192 = vmatpush.msra.mxu0 0.0
  %2193 = vmatpush.msra.mxu0 0.0
  %2194 = vmatpush.msra.mxu0 0.0
  %2195 = vmatpush.msra.mxu0 0.0
  %2196 = vmatpush.msra.mxu0 0.0
  %2197 = vmatpush.msra.mxu0 0.0
  %2198 = vmatpush.msra.mxu0 0.0
  %2199 = vmatpush.msra.mxu0 0.0
  %2200 = vmatpush.msra.mxu0 0.0
  %2201 = vmatpush.msra.mxu0 0.0
  %2202 = vmatpush.msra.mxu0 %v2042
  %2203 = vmatpush.msra.mxu0 %v2041
  %2204 = vmatmul.f32.gmra.mxu0 %v2177
  %v2205 = vpop.f32.mrf.mxu0
  %v2206 = vadd.f32 %v2165, %v2205
  %2207 = vmatmul.f32.gmra.mxu0 %v2180
  %v2208 = vpop.f32.mrf.mxu0
  %v2209 = vadd.f32 %v2168, %v2208
  %2210 = vmatmul.f32.gmra.mxu0 %v2183
  %v2211 = vpop.f32.mrf.mxu0
  %v2212 = vadd.f32 %v2171, %v2211
  %2213 = vmatmul.f32.gmra.mxu0 %v2186
  %v2214 = vpop.f32.mrf.mxu0
  %v2215 = vadd.f32 %v2174, %v2214
  %2216 = vdwg.mxu0
  %v2217 = vld [vmem:[%s5] sm:$0xff]
  %v2218 = vld [vmem:[%s5 + $0x8] sm:$0xff]
  %v2219 = vld [vmem:[%s5 + $0x10] sm:$0xff]
  %v2220 = vld [vmem:[%s5 + $0x18] sm:$0xff]
  %2222 = vset.pattern.permute.xlu0 0
  %2223 = vperm.xlu0 %2222, %v2217
  %v2224 = vpop.permute.xlu0 %2223
  %2227 = vset.pattern.permute.xlu0 0
  %2228 = vperm.xlu0 %2227, %v2218
  %v2229 = vpop.permute.xlu0 %2228
  %2232 = vset.pattern.permute.xlu0 0
  %2233 = vperm.xlu0 %2232, %v2219
  %v2234 = vpop.permute.xlu0 %2233
  %2237 = vset.pattern.permute.xlu0 0
  %2238 = vperm.xlu0 %2237, %v2220
  %v2239 = vpop.permute.xlu0 %2238
  %v2241 = vadd.f32 %v2206, %v2224
  %v2242 = vadd.f32 %v2209, %v2229
  %v2243 = vadd.f32 %v2212, %v2234
  %v2244 = vadd.f32 %v2215, %v2239
  %v2245 = vmax.f32 %v2241, 0.0
  %v2246 = vmax.f32 %v2242, 0.0
  %v2247 = vmax.f32 %v2243, 0.0
  %v2248 = vmax.f32 %v2244, 0.0
  %v2249 = vld [vmem:[%s6] sm:$0xff]
  %v2250 = vld [vmem:[%s7] sm:$0xff]
  %2252 = vset.pattern.permute.xlu0 0
  %2253 = vperm.xlu0 %2252, %v2250
  %v2254 = vpop.permute.xlu0 %2253
  %vm2256 = vcmask 261120
  %v2258 = vsel %vm2256, %v2249, 0
  %2260 = vmatpush.msra.mxu0 0.0
  %2261 = vmatpush.msra.mxu0 0.0
  %2262 = vmatpush.msra.mxu0 0.0
  %2263 = vmatpush.msra.mxu0 0.0
  %2264 = vmatpush.msra.mxu0 0.0
  %2265 = vmatpush.msra.mxu0 0.0
  %2266 = vmatpush.msra.mxu0 0.0
  %2267 = vmatpush.msra.mxu0 0.0
  %2268 = vmatpush.msra.mxu0 0.0
  %2269 = vmatpush.msra.mxu0 0.0
  %2270 = vmatpush.msra.mxu0 0.0
  %2271 = vmatpush.msra.mxu0 0.0
  %2272 = vmatpush.msra.mxu0 %v2248
  %2273 = vmatpush.msra.mxu0 %v2247
  %2274 = vmatpush.msra.mxu0 %v2246
  %2275 = vmatpush.msra.mxu0 %v2245
  %2276 = vmatmul.f32.gmra.mxu0 %v2258
  %v2277 = vpop.f32.mrf.mxu0
  %v2278 = vadd.f32 %v2254, %v2277
  %2279 = vdwg.mxu0
  %v2280 = vxor.u32 %v2278, 2147483648
  %v2281 = vmul.f32 %v2280, 1.442695
  %v2282 = vpow.pop %v2281
  %v2283 = vadd.f32 %v2282, 1.0
  %v2284 = vrcp.pop %v2283
  %v2285 = vmul.f32 %v2283, %v2284
  %v2286 = vsub.f32 1.0, %v2285
  %v2287 = vmul.f32 %v2284, %v2286
  %v2288 = vadd.f32 %v2284, %v2287
  %vm2289 = vweird.f32 %v2283
  %vm2290 = vweird.f32 %v2284
  %vm2291 = vmor %vm2289, %vm2290
  %v2292 = vsel %vm2291, %v2284, %v2288
  %v2293 = vand.u32 2147483647, %v2283
  %vm2294 = vcmp.eq.f32.partialorder %v2293, 8.507059e+37
  %v2295 = vand.u32 %v2283, 2147483648
  %v2296 = vor.u32 1.1754944e-38, %v2295
  %v2297 = vsel %vm2294, %v2296, %v2292
  %v2298 = vmul.f32 1.0, %v2297
  %2299 = vst [vmem:[%s8] sm:$0xff] %v2298
  // Predicated region
  $region34: #{forward.1} parent=0 // pred_check
    _
  $region35: #{forward.1} parent=0 // pred_check_branch
    %2301 = sbr.rel (0) target = $region37
  $region36: #{forward.1} parent=0 // pred_region
    _
  $region37: #{forward.1} parent=0 // pred_fallthru
    _
  // Predicated region
  $region38: #{forward.1} parent=0 // pred_check
    _
  $region39: #{forward.1} parent=0 // pred_check_branch
    %2303 = sbr.rel (0) target = $region41
  $region40: #{forward.1} parent=0 // pred_region
    _
  $region41: #{forward.1} parent=0 // pred_fallthru
    _

</llo_original>
